<compile_context>
chip_gen: v6e
topology: v6e:2x2x1
jax: 0.10.0
libtpu: 0.0.40
codegen_flags: <defaults>
</compile_context>

<pallas_src>
import functools
import math

import jax
import jax.numpy as jnp
from jax import lax
from jax.experimental import pallas as pl
from jax.experimental.pallas import tpu as pltpu


# ----------------------------- Pallas kernel -------------------------------

def lstm_fc_kernel(num_layers, hidden, T, B, *refs):
    """refs = (x_ref [T*B, D] bf16,
               w_ih0T [D,4H] bf16, w_hh0T [H,4H] bf16, b0 [1,4H] f32,
               [w_catT_l [2H,4H] bf16, b_l [1,4H] f32]  for l = 1..L-1,
               fc_w [1,H] f32, fc_b [1,1] f32,
               out_ref [1, B] f32)
    """
    x_ref = refs[0]
    w_ih0_ref, w_hh0_ref, b0_ref = refs[1], refs[2], refs[3]
    idx = 4
    fused_refs = []
    for _ in range(num_layers - 1):
        fused_refs.append((refs[idx], refs[idx + 1]))
        idx += 2
    fc_w_ref = refs[idx]
    fc_b_ref = refs[idx + 1]
    out_ref = refs[idx + 2]

    H = hidden

    # ---- Layer-0 input projection hoisted to ONE matmul; result stays in vregs
    # (at these shapes [T*B, 4H] f32 is ~8 vregs -- no VMEM scratch round trip).
    pre0 = (jnp.dot(x_ref[...], w_ih0_ref[...],
                    preferred_element_type=jnp.float32)
            + b0_ref[...])                                   # [T*B, 4H] f32

    # Weights loaded into vregs once, reused across all timesteps.
    w_hh0 = w_hh0_ref[...]                                   # [H, 4H]  bf16
    w_cats = [w_ref[...] for (w_ref, _) in fused_refs]       # [2H, 4H] bf16
    b_cats = [b_ref[...] for (_, b_ref) in fused_refs]       # [1, 4H]  f32

    def cell(gates, c):
        # Gate order (i, f, g, o).  The g-gate pre-activation columns were
        # pre-scaled by 2 on the host, so tanh(g) == 2*sigmoid(2g) - 1 and a
        # single whole-vreg sigmoid covers all four gates (one EUP pass).
        sig = jax.nn.sigmoid(gates)
        i_g = sig[:, 0 * H:1 * H]
        f_g = sig[:, 1 * H:2 * H]
        g_g = 2.0 * sig[:, 2 * H:3 * H] - 1.0
        o_g = sig[:, 3 * H:4 * H]
        c_new = f_g * c + i_g * g_g
        h_new = o_g * jnp.tanh(c_new)
        return h_new, c_new

    zero = jnp.zeros((B, H), jnp.float32)
    h = [zero] * num_layers                                  # f32 recurrent state
    c = [zero] * num_layers

    # ---- Wavefront: global step s runs layer l at timestep t = s - l, giving
    # `num_layers` independent dependency chains per unrolled iteration.
    for s in range(T + num_layers - 1):
        h_old = list(h)                                      # pre-step snapshot
        for l in range(num_layers):
            t = s - l
            if not (0 <= t < T):
                continue
            if l == 0:
                gates = (pre0[t * B:(t + 1) * B, :]
                         + jnp.dot(h_old[0].astype(jnp.bfloat16), w_hh0,
                                   preferred_element_type=jnp.float32))
            else:
                # Fused input: [h_{l-1}(t), h_l(t-1)] @ [[W_ihT];[W_hhT]] + b
                inp = jnp.concatenate([h_old[l - 1], h_old[l]], axis=-1)
                gates = (jnp.dot(inp.astype(jnp.bfloat16), w_cats[l - 1],
                                 preferred_element_type=jnp.float32)
                         + b_cats[l - 1])
            h[l], c[l] = cell(gates, c[l])

    h_last = h[num_layers - 1]                               # [B, H] f32

    # Final Linear(H, 1): contract H between fc_w [1,H] and h_last [B,H] so the
    # result lands lane-dense as [1, B] (batch on lanes).
    out_row = lax.dot_general(fc_w_ref[...], h_last,
                              dimension_numbers=(((1,), (1,)), ((), ())),
                              preferred_element_type=jnp.float32)
    out_ref[...] = out_row + fc_b_ref[...]                   # [1, B]


# ------------------------------- wrapper ------------------------------------

def lstm_model_forward(x, params, hidden_size, num_layers):
    """x: [B, T, D_in] float32 (batch_first, like PyTorch). Returns [B, 1]."""
    B, T, D = x.shape
    H = hidden_size
    B_pad = ((B + 7) // 8) * 8                 # pad batch to a full sublane tile

    x_tm = jnp.transpose(x, (1, 0, 2))         # time-major [T, B, D]
    if B_pad != B:
        x_tm = jnp.pad(x_tm, ((0, 0), (0, B_pad - B), (0, 0)))
    x_flat = x_tm.reshape(T * B_pad, D).astype(jnp.bfloat16)   # host-side bf16 cast

    def scale_g(a):
        # Pre-scale g-gate columns by 2 (exact in fp) -> tanh via 2*sigmoid(2x)-1.
        return a.at[..., 2 * H:3 * H].multiply(2.0)

    flat_inputs = [x_flat]

    # Layer 0: hoisted x-projection weights + per-step W_hh.
    w_ih0, w_hh0, b_ih0, b_hh0 = params["layers"][0]
    flat_inputs += [
        scale_g(w_ih0.T).astype(jnp.bfloat16),                 # [D, 4H]
        scale_g(w_hh0.T).astype(jnp.bfloat16),                 # [H, 4H]
        scale_g(b_ih0 + b_hh0)[None, :].astype(jnp.float32),   # [1, 4H]
    ]
    # Layers >= 1: stacked [[W_ihT];[W_hhT]] for the fused per-step dot.
    for l in range(1, num_layers):
        w_ih, w_hh, b_ih, b_hh = params["layers"][l]
        w_cat = jnp.concatenate([w_ih.T, w_hh.T], axis=0)      # [2H, 4H]
        flat_inputs += [
            scale_g(w_cat).astype(jnp.bfloat16),
            scale_g(b_ih + b_hh)[None, :].astype(jnp.float32),
        ]
    fc_w, fc_b = params["fc"]
    flat_inputs += [fc_w.astype(jnp.float32),                  # [1, H]
                    fc_b[None, :].astype(jnp.float32)]         # [1, 1]

    kernel = functools.partial(lstm_fc_kernel, num_layers, hidden_size, T, B_pad)

    out = pl.pallas_call(
        kernel,
        out_shape=jax.ShapeDtypeStruct((1, B_pad), jnp.float32),
        in_specs=[pl.BlockSpec(memory_space=pltpu.MemorySpace.VMEM)
                  for _ in flat_inputs],
        out_specs=pl.BlockSpec(memory_space=pltpu.MemorySpace.VMEM),
    )(*flat_inputs)
    return jnp.transpose(out)[:B]              # [1, B_pad] -> [B, 1]


# --------------------------- pure-JAX reference ------------------------------

def lstm_model_reference(x, params, hidden_size, num_layers):
    B, T, D = x.shape
    h_seq = x
    for l in range(num_layers):
        w_ih, w_hh, b_ih, b_hh = params["layers"][l]
        h = jnp.zeros((B, hidden_size), jnp.float32)
        c = jnp.zeros((B, hidden_size), jnp.float32)
        outs = []
        for t in range(T):
            gates = h_seq[:, t, :] @ w_ih.T + h @ w_hh.T + b_ih + b_hh
            i_g, f_g, g_g, o_g = jnp.split(gates, 4, axis=-1)
            i_g = jax.nn.sigmoid(i_g)
            f_g = jax.nn.sigmoid(f_g)
            g_g = jnp.tanh(g_g)
            o_g = jax.nn.sigmoid(o_g)
            c = f_g * c + i_g * g_g
            h = o_g * jnp.tanh(c)
            outs.append(h)
        h_seq = jnp.stack(outs, axis=1)
    fc_w, fc_b = params["fc"]
    return h_seq[:, -1, :] @ fc_w.T + fc_b


# ------------------------------ param init -----------------------------------

def init_params(key, input_size, hidden_size, num_layers):
    """PyTorch-style init: uniform(-1/sqrt(H), 1/sqrt(H)), deterministic."""
    k = 1.0 / math.sqrt(hidden_size)
    layers = []
    for l in range(num_layers):
        in_dim = input_size if l == 0 else hidden_size
        key, k1, k2, k3, k4 = jax.random.split(key, 5)
        w_ih = jax.random.uniform(k1, (4 * hidden_size, in_dim),
                                  jnp.float32, -k, k)
        w_hh = jax.random.uniform(k2, (4 * hidden_size, hidden_size),
                                  jnp.float32, -k, k)
        b_ih = jax.random.uniform(k3, (4 * hidden_size,), jnp.float32, -k, k)
        b_hh = jax.random.uniform(k4, (4 * hidden_size,), jnp.float32, -k, k)
        layers.append((w_ih, w_hh, b_ih, b_hh))
    key, k1, k2 = jax.random.split(key, 3)
    kf = 1.0 / math.sqrt(hidden_size)
    fc_w = jax.random.uniform(k1, (1, hidden_size), jnp.float32, -kf, kf)
    fc_b = jax.random.uniform(k2, (1,), jnp.float32, -kf, kf)
    return {"layers": layers, "fc": (fc_w, fc_b)}


# --------------------------------- main ---------------------------------------

if __name__ == "__main__":
    BATCH = 4
    SEQ = 8
    INPUT_SIZE = 16
    HIDDEN = 32
    NUM_LAYERS = 2
    # dropout=0.1 in the module config is a no-op at inference time.

    key = jax.random.PRNGKey(0)
    key, kx, kp = jax.random.split(key, 3)
    x = jax.random.normal(kx, (BATCH, SEQ, INPUT_SIZE), jnp.float32)
    params = init_params(kp, INPUT_SIZE, HIDDEN, NUM_LAYERS)

    out = lstm_model_forward(x, params, HIDDEN, NUM_LAYERS)
    out = jax.block_until_ready(out)

    ref = lstm_model_reference(x, params, HIDDEN, NUM_LAYERS)
    assert out.shape == (BATCH, 1), out.shape
    # bf16 matmul operands (f32 accumulate) + sigmoid-based tanh give ~1e-3-level
    # deviations from the all-f32 reference; 1e-2 tolerance covers it comfortably.
    assert jnp.allclose(out, ref, atol=1e-2, rtol=1e-2), (out, ref)

    print("KERNEL_OK")
</pallas_src>

<mosaic_0001>
module attributes {stable_mosaic.version = 11 : i64} {
  func.func @lstm_fc_kernel(%arg0: memref<64x16xbf16, #tpu.memory_space<vmem>>, %arg1: memref<16x128xbf16, #tpu.memory_space<vmem>>, %arg2: memref<32x128xbf16, #tpu.memory_space<vmem>>, %arg3: memref<1x128xf32, #tpu.memory_space<vmem>>, %arg4: memref<64x128xbf16, #tpu.memory_space<vmem>>, %arg5: memref<1x128xf32, #tpu.memory_space<vmem>>, %arg6: memref<1x32xf32, #tpu.memory_space<vmem>>, %arg7: memref<1x1xf32, #tpu.memory_space<vmem>>, %arg8: memref<1x8xf32, #tpu.memory_space<vmem>>) attributes {dimension_semantics = [], scalar_prefetch = 0 : i64, scratch_operands = 0 : i64, tpu.core_type = #tpu.core_type<tc>} {
    %c0 = arith.constant 0 : index
    %c0_0 = arith.constant 0 : index
    %0 = vector.load %arg0[%c0, %c0_0] : memref<64x16xbf16, #tpu.memory_space<vmem>>, vector<64x16xbf16>
    %c0_1 = arith.constant 0 : index
    %c0_2 = arith.constant 0 : index
    %1 = vector.load %arg1[%c0_1, %c0_2] : memref<16x128xbf16, #tpu.memory_space<vmem>>, vector<16x128xbf16>
    %cst = arith.constant dense<0.000000e+00> : vector<64x128xf32>
    %2 = tpu.matmul %0, %1, %cst {dimension_numbers = #tpu.dot_dimension_numbers<[1], [0], [0], [1], [0, 0, 1, 1], [], []>} : vector<64x16xbf16>, vector<16x128xbf16>, vector<64x128xf32> -> vector<64x128xf32>
    %c0_3 = arith.constant 0 : index
    %c0_4 = arith.constant 0 : index
    %3 = vector.load %arg3[%c0_3, %c0_4] : memref<1x128xf32, #tpu.memory_space<vmem>>, vector<1x128xf32>
    %4 = vector.broadcast %3 : vector<1x128xf32> to vector<64x128xf32>
    %5 = arith.addf %2, %4 : vector<64x128xf32>
    %c0_5 = arith.constant 0 : index
    %c0_6 = arith.constant 0 : index
    %6 = vector.load %arg2[%c0_5, %c0_6] : memref<32x128xbf16, #tpu.memory_space<vmem>>, vector<32x128xbf16>
    %c0_7 = arith.constant 0 : index
    %c0_8 = arith.constant 0 : index
    %7 = vector.load %arg4[%c0_7, %c0_8] : memref<64x128xbf16, #tpu.memory_space<vmem>>, vector<64x128xbf16>
    %c0_9 = arith.constant 0 : index
    %c0_10 = arith.constant 0 : index
    %8 = vector.load %arg5[%c0_9, %c0_10] : memref<1x128xf32, #tpu.memory_space<vmem>>, vector<1x128xf32>
    %cst_11 = arith.constant 0.000000e+00 : f32
    %9 = vector.broadcast %cst_11 : f32 to vector<8x32xf32>
    %10 = vector.extract_strided_slice %5 {offsets = [0, 0], sizes = [8, 128], strides = [1, 1]} : vector<64x128xf32> to vector<8x128xf32>
    %11 = arith.truncf %9 : vector<8x32xf32> to vector<8x32xbf16>
    %cst_12 = arith.constant dense<0.000000e+00> : vector<8x128xf32>
    %12 = tpu.matmul %11, %6, %cst_12 {dimension_numbers = #tpu.dot_dimension_numbers<[1], [0], [0], [1], [0, 0, 1, 1], [], []>} : vector<8x32xbf16>, vector<32x128xbf16>, vector<8x128xf32> -> vector<8x128xf32>
    %13 = arith.addf %10, %12 : vector<8x128xf32>
    %14 = arith.negf %13 : vector<8x128xf32>
    %15 = math.exp %14 : vector<8x128xf32>
    %cst_13 = arith.constant 1.000000e+00 : f32
    %16 = vector.broadcast %cst_13 : f32 to vector<8x128xf32>
    %17 = arith.addf %16, %15 : vector<8x128xf32>
    %18 = arith.divf %16, %17 : vector<8x128xf32>
    %19 = vector.extract_strided_slice %18 {offsets = [0, 0], sizes = [8, 32], strides = [1, 1]} : vector<8x128xf32> to vector<8x32xf32>
    %20 = vector.extract_strided_slice %18 {offsets = [0, 32], sizes = [8, 32], strides = [1, 1]} : vector<8x128xf32> to vector<8x32xf32>
    %21 = vector.extract_strided_slice %18 {offsets = [0, 64], sizes = [8, 32], strides = [1, 1]} : vector<8x128xf32> to vector<8x32xf32>
    %cst_14 = arith.constant 2.000000e+00 : f32
    %22 = vector.broadcast %cst_14 : f32 to vector<8x32xf32>
    %23 = arith.mulf %22, %21 : vector<8x32xf32>
    %cst_15 = arith.constant 1.000000e+00 : f32
    %24 = vector.broadcast %cst_15 : f32 to vector<8x32xf32>
    %25 = arith.subf %23, %24 : vector<8x32xf32>
    %26 = vector.extract_strided_slice %18 {offsets = [0, 96], sizes = [8, 32], strides = [1, 1]} : vector<8x128xf32> to vector<8x32xf32>
    %27 = arith.mulf %20, %9 : vector<8x32xf32>
    %28 = arith.mulf %19, %25 : vector<8x32xf32>
    %29 = arith.addf %27, %28 : vector<8x32xf32>
    %30 = math.tanh %29 : vector<8x32xf32>
    %31 = arith.mulf %26, %30 : vector<8x32xf32>
    %32 = vector.extract_strided_slice %5 {offsets = [8, 0], sizes = [8, 128], strides = [1, 1]} : vector<64x128xf32> to vector<8x128xf32>
    %33 = arith.truncf %31 : vector<8x32xf32> to vector<8x32xbf16>
    %cst_16 = arith.constant dense<0.000000e+00> : vector<8x128xf32>
    %34 = tpu.matmul %33, %6, %cst_16 {dimension_numbers = #tpu.dot_dimension_numbers<[1], [0], [0], [1], [0, 0, 1, 1], [], []>} : vector<8x32xbf16>, vector<32x128xbf16>, vector<8x128xf32> -> vector<8x128xf32>
    %35 = arith.addf %32, %34 : vector<8x128xf32>
    %36 = arith.negf %35 : vector<8x128xf32>
    %37 = math.exp %36 : vector<8x128xf32>
    %cst_17 = arith.constant 1.000000e+00 : f32
    %38 = vector.broadcast %cst_17 : f32 to vector<8x128xf32>
    %39 = arith.addf %38, %37 : vector<8x128xf32>
    %40 = arith.divf %38, %39 : vector<8x128xf32>
    %41 = vector.extract_strided_slice %40 {offsets = [0, 0], sizes = [8, 32], strides = [1, 1]} : vector<8x128xf32> to vector<8x32xf32>
    %42 = vector.extract_strided_slice %40 {offsets = [0, 32], sizes = [8, 32], strides = [1, 1]} : vector<8x128xf32> to vector<8x32xf32>
    %43 = vector.extract_strided_slice %40 {offsets = [0, 64], sizes = [8, 32], strides = [1, 1]} : vector<8x128xf32> to vector<8x32xf32>
    %cst_18 = arith.constant 2.000000e+00 : f32
    %44 = vector.broadcast %cst_18 : f32 to vector<8x32xf32>
    %45 = arith.mulf %44, %43 : vector<8x32xf32>
    %cst_19 = arith.constant 1.000000e+00 : f32
    %46 = vector.broadcast %cst_19 : f32 to vector<8x32xf32>
    %47 = arith.subf %45, %46 : vector<8x32xf32>
    %48 = vector.extract_strided_slice %40 {offsets = [0, 96], sizes = [8, 32], strides = [1, 1]} : vector<8x128xf32> to vector<8x32xf32>
    %49 = arith.mulf %42, %29 : vector<8x32xf32>
    %50 = arith.mulf %41, %47 : vector<8x32xf32>
    %51 = arith.addf %49, %50 : vector<8x32xf32>
    %52 = math.tanh %51 : vector<8x32xf32>
    %53 = arith.mulf %48, %52 : vector<8x32xf32>
    %54 = tpu.concatenate %31, %9 in 1 : vector<8x32xf32>, vector<8x32xf32> -> vector<8x64xf32>
    %55 = arith.truncf %54 : vector<8x64xf32> to vector<8x64xbf16>
    %cst_20 = arith.constant dense<0.000000e+00> : vector<8x128xf32>
    %56 = tpu.matmul %55, %7, %cst_20 {dimension_numbers = #tpu.dot_dimension_numbers<[1], [0], [0], [1], [0, 0, 1, 1], [], []>} : vector<8x64xbf16>, vector<64x128xbf16>, vector<8x128xf32> -> vector<8x128xf32>
    %57 = vector.broadcast %8 : vector<1x128xf32> to vector<8x128xf32>
    %58 = arith.addf %56, %57 : vector<8x128xf32>
    %59 = arith.negf %58 : vector<8x128xf32>
    %60 = math.exp %59 : vector<8x128xf32>
    %cst_21 = arith.constant 1.000000e+00 : f32
    %61 = vector.broadcast %cst_21 : f32 to vector<8x128xf32>
    %62 = arith.addf %61, %60 : vector<8x128xf32>
    %63 = arith.divf %61, %62 : vector<8x128xf32>
    %64 = vector.extract_strided_slice %63 {offsets = [0, 0], sizes = [8, 32], strides = [1, 1]} : vector<8x128xf32> to vector<8x32xf32>
    %65 = vector.extract_strided_slice %63 {offsets = [0, 32], sizes = [8, 32], strides = [1, 1]} : vector<8x128xf32> to vector<8x32xf32>
    %66 = vector.extract_strided_slice %63 {offsets = [0, 64], sizes = [8, 32], strides = [1, 1]} : vector<8x128xf32> to vector<8x32xf32>
    %cst_22 = arith.constant 2.000000e+00 : f32
    %67 = vector.broadcast %cst_22 : f32 to vector<8x32xf32>
    %68 = arith.mulf %67, %66 : vector<8x32xf32>
    %cst_23 = arith.constant 1.000000e+00 : f32
    %69 = vector.broadcast %cst_23 : f32 to vector<8x32xf32>
    %70 = arith.subf %68, %69 : vector<8x32xf32>
    %71 = vector.extract_strided_slice %63 {offsets = [0, 96], sizes = [8, 32], strides = [1, 1]} : vector<8x128xf32> to vector<8x32xf32>
    %72 = arith.mulf %65, %9 : vector<8x32xf32>
    %73 = arith.mulf %64, %70 : vector<8x32xf32>
    %74 = arith.addf %72, %73 : vector<8x32xf32>
    %75 = math.tanh %74 : vector<8x32xf32>
    %76 = arith.mulf %71, %75 : vector<8x32xf32>
    %77 = vector.extract_strided_slice %5 {offsets = [16, 0], sizes = [8, 128], strides = [1, 1]} : vector<64x128xf32> to vector<8x128xf32>
    %78 = arith.truncf %53 : vector<8x32xf32> to vector<8x32xbf16>
    %cst_24 = arith.constant dense<0.000000e+00> : vector<8x128xf32>
    %79 = tpu.matmul %78, %6, %cst_24 {dimension_numbers = #tpu.dot_dimension_numbers<[1], [0], [0], [1], [0, 0, 1, 1], [], []>} : vector<8x32xbf16>, vector<32x128xbf16>, vector<8x128xf32> -> vector<8x128xf32>
    %80 = arith.addf %77, %79 : vector<8x128xf32>
    %81 = arith.negf %80 : vector<8x128xf32>
    %82 = math.exp %81 : vector<8x128xf32>
    %cst_25 = arith.constant 1.000000e+00 : f32
    %83 = vector.broadcast %cst_25 : f32 to vector<8x128xf32>
    %84 = arith.addf %83, %82 : vector<8x128xf32>
    %85 = arith.divf %83, %84 : vector<8x128xf32>
    %86 = vector.extract_strided_slice %85 {offsets = [0, 0], sizes = [8, 32], strides = [1, 1]} : vector<8x128xf32> to vector<8x32xf32>
    %87 = vector.extract_strided_slice %85 {offsets = [0, 32], sizes = [8, 32], strides = [1, 1]} : vector<8x128xf32> to vector<8x32xf32>
    %88 = vector.extract_strided_slice %85 {offsets = [0, 64], sizes = [8, 32], strides = [1, 1]} : vector<8x128xf32> to vector<8x32xf32>
    %cst_26 = arith.constant 2.000000e+00 : f32
    %89 = vector.broadcast %cst_26 : f32 to vector<8x32xf32>
    %90 = arith.mulf %89, %88 : vector<8x32xf32>
    %cst_27 = arith.constant 1.000000e+00 : f32
    %91 = vector.broadcast %cst_27 : f32 to vector<8x32xf32>
    %92 = arith.subf %90, %91 : vector<8x32xf32>
    %93 = vector.extract_strided_slice %85 {offsets = [0, 96], sizes = [8, 32], strides = [1, 1]} : vector<8x128xf32> to vector<8x32xf32>
    %94 = arith.mulf %87, %51 : vector<8x32xf32>
    %95 = arith.mulf %86, %92 : vector<8x32xf32>
    %96 = arith.addf %94, %95 : vector<8x32xf32>
    %97 = math.tanh %96 : vector<8x32xf32>
    %98 = arith.mulf %93, %97 : vector<8x32xf32>
    %99 = tpu.concatenate %53, %76 in 1 : vector<8x32xf32>, vector<8x32xf32> -> vector<8x64xf32>
    %100 = arith.truncf %99 : vector<8x64xf32> to vector<8x64xbf16>
    %cst_28 = arith.constant dense<0.000000e+00> : vector<8x128xf32>
    %101 = tpu.matmul %100, %7, %cst_28 {dimension_numbers = #tpu.dot_dimension_numbers<[1], [0], [0], [1], [0, 0, 1, 1], [], []>} : vector<8x64xbf16>, vector<64x128xbf16>, vector<8x128xf32> -> vector<8x128xf32>
    %102 = vector.broadcast %8 : vector<1x128xf32> to vector<8x128xf32>
    %103 = arith.addf %101, %102 : vector<8x128xf32>
    %104 = arith.negf %103 : vector<8x128xf32>
    %105 = math.exp %104 : vector<8x128xf32>
    %cst_29 = arith.constant 1.000000e+00 : f32
    %106 = vector.broadcast %cst_29 : f32 to vector<8x128xf32>
    %107 = arith.addf %106, %105 : vector<8x128xf32>
    %108 = arith.divf %106, %107 : vector<8x128xf32>
    %109 = vector.extract_strided_slice %108 {offsets = [0, 0], sizes = [8, 32], strides = [1, 1]} : vector<8x128xf32> to vector<8x32xf32>
    %110 = vector.extract_strided_slice %108 {offsets = [0, 32], sizes = [8, 32], strides = [1, 1]} : vector<8x128xf32> to vector<8x32xf32>
    %111 = vector.extract_strided_slice %108 {offsets = [0, 64], sizes = [8, 32], strides = [1, 1]} : vector<8x128xf32> to vector<8x32xf32>
    %cst_30 = arith.constant 2.000000e+00 : f32
    %112 = vector.broadcast %cst_30 : f32 to vector<8x32xf32>
    %113 = arith.mulf %112, %111 : vector<8x32xf32>
    %cst_31 = arith.constant 1.000000e+00 : f32
    %114 = vector.broadcast %cst_31 : f32 to vector<8x32xf32>
    %115 = arith.subf %113, %114 : vector<8x32xf32>
    %116 = vector.extract_strided_slice %108 {offsets = [0, 96], sizes = [8, 32], strides = [1, 1]} : vector<8x128xf32> to vector<8x32xf32>
    %117 = arith.mulf %110, %74 : vector<8x32xf32>
    %118 = arith.mulf %109, %115 : vector<8x32xf32>
    %119 = arith.addf %117, %118 : vector<8x32xf32>
    %120 = math.tanh %119 : vector<8x32xf32>
    %121 = arith.mulf %116, %120 : vector<8x32xf32>
    %122 = vector.extract_strided_slice %5 {offsets = [24, 0], sizes = [8, 128], strides = [1, 1]} : vector<64x128xf32> to vector<8x128xf32>
    %123 = arith.truncf %98 : vector<8x32xf32> to vector<8x32xbf16>
    %cst_32 = arith.constant dense<0.000000e+00> : vector<8x128xf32>
    %124 = tpu.matmul %123, %6, %cst_32 {dimension_numbers = #tpu.dot_dimension_numbers<[1], [0], [0], [1], [0, 0, 1, 1], [], []>} : vector<8x32xbf16>, vector<32x128xbf16>, vector<8x128xf32> -> vector<8x128xf32>
    %125 = arith.addf %122, %124 : vector<8x128xf32>
    %126 = arith.negf %125 : vector<8x128xf32>
    %127 = math.exp %126 : vector<8x128xf32>
    %cst_33 = arith.constant 1.000000e+00 : f32
    %128 = vector.broadcast %cst_33 : f32 to vector<8x128xf32>
    %129 = arith.addf %128, %127 : vector<8x128xf32>
    %130 = arith.divf %128, %129 : vector<8x128xf32>
    %131 = vector.extract_strided_slice %130 {offsets = [0, 0], sizes = [8, 32], strides = [1, 1]} : vector<8x128xf32> to vector<8x32xf32>
    %132 = vector.extract_strided_slice %130 {offsets = [0, 32], sizes = [8, 32], strides = [1, 1]} : vector<8x128xf32> to vector<8x32xf32>
    %133 = vector.extract_strided_slice %130 {offsets = [0, 64], sizes = [8, 32], strides = [1, 1]} : vector<8x128xf32> to vector<8x32xf32>
    %cst_34 = arith.constant 2.000000e+00 : f32
    %134 = vector.broadcast %cst_34 : f32 to vector<8x32xf32>
    %135 = arith.mulf %134, %133 : vector<8x32xf32>
    %cst_35 = arith.constant 1.000000e+00 : f32
    %136 = vector.broadcast %cst_35 : f32 to vector<8x32xf32>
    %137 = arith.subf %135, %136 : vector<8x32xf32>
    %138 = vector.extract_strided_slice %130 {offsets = [0, 96], sizes = [8, 32], strides = [1, 1]} : vector<8x128xf32> to vector<8x32xf32>
    %139 = arith.mulf %132, %96 : vector<8x32xf32>
    %140 = arith.mulf %131, %137 : vector<8x32xf32>
    %141 = arith.addf %139, %140 : vector<8x32xf32>
    %142 = math.tanh %141 : vector<8x32xf32>
    %143 = arith.mulf %138, %142 : vector<8x32xf32>
    %144 = tpu.concatenate %98, %121 in 1 : vector<8x32xf32>, vector<8x32xf32> -> vector<8x64xf32>
    %145 = arith.truncf %144 : vector<8x64xf32> to vector<8x64xbf16>
    %cst_36 = arith.constant dense<0.000000e+00> : vector<8x128xf32>
    %146 = tpu.matmul %145, %7, %cst_36 {dimension_numbers = #tpu.dot_dimension_numbers<[1], [0], [0], [1], [0, 0, 1, 1], [], []>} : vector<8x64xbf16>, vector<64x128xbf16>, vector<8x128xf32> -> vector<8x128xf32>
    %147 = vector.broadcast %8 : vector<1x128xf32> to vector<8x128xf32>
    %148 = arith.addf %146, %147 : vector<8x128xf32>
    %149 = arith.negf %148 : vector<8x128xf32>
    %150 = math.exp %149 : vector<8x128xf32>
    %cst_37 = arith.constant 1.000000e+00 : f32
    %151 = vector.broadcast %cst_37 : f32 to vector<8x128xf32>
    %152 = arith.addf %151, %150 : vector<8x128xf32>
    %153 = arith.divf %151, %152 : vector<8x128xf32>
    %154 = vector.extract_strided_slice %153 {offsets = [0, 0], sizes = [8, 32], strides = [1, 1]} : vector<8x128xf32> to vector<8x32xf32>
    %155 = vector.extract_strided_slice %153 {offsets = [0, 32], sizes = [8, 32], strides = [1, 1]} : vector<8x128xf32> to vector<8x32xf32>
    %156 = vector.extract_strided_slice %153 {offsets = [0, 64], sizes = [8, 32], strides = [1, 1]} : vector<8x128xf32> to vector<8x32xf32>
    %cst_38 = arith.constant 2.000000e+00 : f32
    %157 = vector.broadcast %cst_38 : f32 to vector<8x32xf32>
    %158 = arith.mulf %157, %156 : vector<8x32xf32>
    %cst_39 = arith.constant 1.000000e+00 : f32
    %159 = vector.broadcast %cst_39 : f32 to vector<8x32xf32>
    %160 = arith.subf %158, %159 : vector<8x32xf32>
    %161 = vector.extract_strided_slice %153 {offsets = [0, 96], sizes = [8, 32], strides = [1, 1]} : vector<8x128xf32> to vector<8x32xf32>
    %162 = arith.mulf %155, %119 : vector<8x32xf32>
    %163 = arith.mulf %154, %160 : vector<8x32xf32>
    %164 = arith.addf %162, %163 : vector<8x32xf32>
    %165 = math.tanh %164 : vector<8x32xf32>
    %166 = arith.mulf %161, %165 : vector<8x32xf32>
    %167 = vector.extract_strided_slice %5 {offsets = [32, 0], sizes = [8, 128], strides = [1, 1]} : vector<64x128xf32> to vector<8x128xf32>
    %168 = arith.truncf %143 : vector<8x32xf32> to vector<8x32xbf16>
    %cst_40 = arith.constant dense<0.000000e+00> : vector<8x128xf32>
    %169 = tpu.matmul %168, %6, %cst_40 {dimension_numbers = #tpu.dot_dimension_numbers<[1], [0], [0], [1], [0, 0, 1, 1], [], []>} : vector<8x32xbf16>, vector<32x128xbf16>, vector<8x128xf32> -> vector<8x128xf32>
    %170 = arith.addf %167, %169 : vector<8x128xf32>
    %171 = arith.negf %170 : vector<8x128xf32>
    %172 = math.exp %171 : vector<8x128xf32>
    %cst_41 = arith.constant 1.000000e+00 : f32
    %173 = vector.broadcast %cst_41 : f32 to vector<8x128xf32>
    %174 = arith.addf %173, %172 : vector<8x128xf32>
    %175 = arith.divf %173, %174 : vector<8x128xf32>
    %176 = vector.extract_strided_slice %175 {offsets = [0, 0], sizes = [8, 32], strides = [1, 1]} : vector<8x128xf32> to vector<8x32xf32>
    %177 = vector.extract_strided_slice %175 {offsets = [0, 32], sizes = [8, 32], strides = [1, 1]} : vector<8x128xf32> to vector<8x32xf32>
    %178 = vector.extract_strided_slice %175 {offsets = [0, 64], sizes = [8, 32], strides = [1, 1]} : vector<8x128xf32> to vector<8x32xf32>
    %cst_42 = arith.constant 2.000000e+00 : f32
    %179 = vector.broadcast %cst_42 : f32 to vector<8x32xf32>
    %180 = arith.mulf %179, %178 : vector<8x32xf32>
    %cst_43 = arith.constant 1.000000e+00 : f32
    %181 = vector.broadcast %cst_43 : f32 to vector<8x32xf32>
    %182 = arith.subf %180, %181 : vector<8x32xf32>
    %183 = vector.extract_strided_slice %175 {offsets = [0, 96], sizes = [8, 32], strides = [1, 1]} : vector<8x128xf32> to vector<8x32xf32>
    %184 = arith.mulf %177, %141 : vector<8x32xf32>
    %185 = arith.mulf %176, %182 : vector<8x32xf32>
    %186 = arith.addf %184, %185 : vector<8x32xf32>
    %187 = math.tanh %186 : vector<8x32xf32>
    %188 = arith.mulf %183, %187 : vector<8x32xf32>
    %189 = tpu.concatenate %143, %166 in 1 : vector<8x32xf32>, vector<8x32xf32> -> vector<8x64xf32>
    %190 = arith.truncf %189 : vector<8x64xf32> to vector<8x64xbf16>
    %cst_44 = arith.constant dense<0.000000e+00> : vector<8x128xf32>
    %191 = tpu.matmul %190, %7, %cst_44 {dimension_numbers = #tpu.dot_dimension_numbers<[1], [0], [0], [1], [0, 0, 1, 1], [], []>} : vector<8x64xbf16>, vector<64x128xbf16>, vector<8x128xf32> -> vector<8x128xf32>
    %192 = vector.broadcast %8 : vector<1x128xf32> to vector<8x128xf32>
    %193 = arith.addf %191, %192 : vector<8x128xf32>
    %194 = arith.negf %193 : vector<8x128xf32>
    %195 = math.exp %194 : vector<8x128xf32>
    %cst_45 = arith.constant 1.000000e+00 : f32
    %196 = vector.broadcast %cst_45 : f32 to vector<8x128xf32>
    %197 = arith.addf %196, %195 : vector<8x128xf32>
    %198 = arith.divf %196, %197 : vector<8x128xf32>
    %199 = vector.extract_strided_slice %198 {offsets = [0, 0], sizes = [8, 32], strides = [1, 1]} : vector<8x128xf32> to vector<8x32xf32>
    %200 = vector.extract_strided_slice %198 {offsets = [0, 32], sizes = [8, 32], strides = [1, 1]} : vector<8x128xf32> to vector<8x32xf32>
    %201 = vector.extract_strided_slice %198 {offsets = [0, 64], sizes = [8, 32], strides = [1, 1]} : vector<8x128xf32> to vector<8x32xf32>
    %cst_46 = arith.constant 2.000000e+00 : f32
    %202 = vector.broadcast %cst_46 : f32 to vector<8x32xf32>
    %203 = arith.mulf %202, %201 : vector<8x32xf32>
    %cst_47 = arith.constant 1.000000e+00 : f32
    %204 = vector.broadcast %cst_47 : f32 to vector<8x32xf32>
    %205 = arith.subf %203, %204 : vector<8x32xf32>
    %206 = vector.extract_strided_slice %198 {offsets = [0, 96], sizes = [8, 32], strides = [1, 1]} : vector<8x128xf32> to vector<8x32xf32>
    %207 = arith.mulf %200, %164 : vector<8x32xf32>
    %208 = arith.mulf %199, %205 : vector<8x32xf32>
    %209 = arith.addf %207, %208 : vector<8x32xf32>
    %210 = math.tanh %209 : vector<8x32xf32>
    %211 = arith.mulf %206, %210 : vector<8x32xf32>
    %212 = vector.extract_strided_slice %5 {offsets = [40, 0], sizes = [8, 128], strides = [1, 1]} : vector<64x128xf32> to vector<8x128xf32>
    %213 = arith.truncf %188 : vector<8x32xf32> to vector<8x32xbf16>
    %cst_48 = arith.constant dense<0.000000e+00> : vector<8x128xf32>
    %214 = tpu.matmul %213, %6, %cst_48 {dimension_numbers = #tpu.dot_dimension_numbers<[1], [0], [0], [1], [0, 0, 1, 1], [], []>} : vector<8x32xbf16>, vector<32x128xbf16>, vector<8x128xf32> -> vector<8x128xf32>
    %215 = arith.addf %212, %214 : vector<8x128xf32>
    %216 = arith.negf %215 : vector<8x128xf32>
    %217 = math.exp %216 : vector<8x128xf32>
    %cst_49 = arith.constant 1.000000e+00 : f32
    %218 = vector.broadcast %cst_49 : f32 to vector<8x128xf32>
    %219 = arith.addf %218, %217 : vector<8x128xf32>
    %220 = arith.divf %218, %219 : vector<8x128xf32>
    %221 = vector.extract_strided_slice %220 {offsets = [0, 0], sizes = [8, 32], strides = [1, 1]} : vector<8x128xf32> to vector<8x32xf32>
    %222 = vector.extract_strided_slice %220 {offsets = [0, 32], sizes = [8, 32], strides = [1, 1]} : vector<8x128xf32> to vector<8x32xf32>
    %223 = vector.extract_strided_slice %220 {offsets = [0, 64], sizes = [8, 32], strides = [1, 1]} : vector<8x128xf32> to vector<8x32xf32>
    %cst_50 = arith.constant 2.000000e+00 : f32
    %224 = vector.broadcast %cst_50 : f32 to vector<8x32xf32>
    %225 = arith.mulf %224, %223 : vector<8x32xf32>
    %cst_51 = arith.constant 1.000000e+00 : f32
    %226 = vector.broadcast %cst_51 : f32 to vector<8x32xf32>
    %227 = arith.subf %225, %226 : vector<8x32xf32>
    %228 = vector.extract_strided_slice %220 {offsets = [0, 96], sizes = [8, 32], strides = [1, 1]} : vector<8x128xf32> to vector<8x32xf32>
    %229 = arith.mulf %222, %186 : vector<8x32xf32>
    %230 = arith.mulf %221, %227 : vector<8x32xf32>
    %231 = arith.addf %229, %230 : vector<8x32xf32>
    %232 = math.tanh %231 : vector<8x32xf32>
    %233 = arith.mulf %228, %232 : vector<8x32xf32>
    %234 = tpu.concatenate %188, %211 in 1 : vector<8x32xf32>, vector<8x32xf32> -> vector<8x64xf32>
    %235 = arith.truncf %234 : vector<8x64xf32> to vector<8x64xbf16>
    %cst_52 = arith.constant dense<0.000000e+00> : vector<8x128xf32>
    %236 = tpu.matmul %235, %7, %cst_52 {dimension_numbers = #tpu.dot_dimension_numbers<[1], [0], [0], [1], [0, 0, 1, 1], [], []>} : vector<8x64xbf16>, vector<64x128xbf16>, vector<8x128xf32> -> vector<8x128xf32>
    %237 = vector.broadcast %8 : vector<1x128xf32> to vector<8x128xf32>
    %238 = arith.addf %236, %237 : vector<8x128xf32>
    %239 = arith.negf %238 : vector<8x128xf32>
    %240 = math.exp %239 : vector<8x128xf32>
    %cst_53 = arith.constant 1.000000e+00 : f32
    %241 = vector.broadcast %cst_53 : f32 to vector<8x128xf32>
    %242 = arith.addf %241, %240 : vector<8x128xf32>
    %243 = arith.divf %241, %242 : vector<8x128xf32>
    %244 = vector.extract_strided_slice %243 {offsets = [0, 0], sizes = [8, 32], strides = [1, 1]} : vector<8x128xf32> to vector<8x32xf32>
    %245 = vector.extract_strided_slice %243 {offsets = [0, 32], sizes = [8, 32], strides = [1, 1]} : vector<8x128xf32> to vector<8x32xf32>
    %246 = vector.extract_strided_slice %243 {offsets = [0, 64], sizes = [8, 32], strides = [1, 1]} : vector<8x128xf32> to vector<8x32xf32>
    %cst_54 = arith.constant 2.000000e+00 : f32
    %247 = vector.broadcast %cst_54 : f32 to vector<8x32xf32>
    %248 = arith.mulf %247, %246 : vector<8x32xf32>
    %cst_55 = arith.constant 1.000000e+00 : f32
    %249 = vector.broadcast %cst_55 : f32 to vector<8x32xf32>
    %250 = arith.subf %248, %249 : vector<8x32xf32>
    %251 = vector.extract_strided_slice %243 {offsets = [0, 96], sizes = [8, 32], strides = [1, 1]} : vector<8x128xf32> to vector<8x32xf32>
    %252 = arith.mulf %245, %209 : vector<8x32xf32>
    %253 = arith.mulf %244, %250 : vector<8x32xf32>
    %254 = arith.addf %252, %253 : vector<8x32xf32>
    %255 = math.tanh %254 : vector<8x32xf32>
    %256 = arith.mulf %251, %255 : vector<8x32xf32>
    %257 = vector.extract_strided_slice %5 {offsets = [48, 0], sizes = [8, 128], strides = [1, 1]} : vector<64x128xf32> to vector<8x128xf32>
    %258 = arith.truncf %233 : vector<8x32xf32> to vector<8x32xbf16>
    %cst_56 = arith.constant dense<0.000000e+00> : vector<8x128xf32>
    %259 = tpu.matmul %258, %6, %cst_56 {dimension_numbers = #tpu.dot_dimension_numbers<[1], [0], [0], [1], [0, 0, 1, 1], [], []>} : vector<8x32xbf16>, vector<32x128xbf16>, vector<8x128xf32> -> vector<8x128xf32>
    %260 = arith.addf %257, %259 : vector<8x128xf32>
    %261 = arith.negf %260 : vector<8x128xf32>
    %262 = math.exp %261 : vector<8x128xf32>
    %cst_57 = arith.constant 1.000000e+00 : f32
    %263 = vector.broadcast %cst_57 : f32 to vector<8x128xf32>
    %264 = arith.addf %263, %262 : vector<8x128xf32>
    %265 = arith.divf %263, %264 : vector<8x128xf32>
    %266 = vector.extract_strided_slice %265 {offsets = [0, 0], sizes = [8, 32], strides = [1, 1]} : vector<8x128xf32> to vector<8x32xf32>
    %267 = vector.extract_strided_slice %265 {offsets = [0, 32], sizes = [8, 32], strides = [1, 1]} : vector<8x128xf32> to vector<8x32xf32>
    %268 = vector.extract_strided_slice %265 {offsets = [0, 64], sizes = [8, 32], strides = [1, 1]} : vector<8x128xf32> to vector<8x32xf32>
    %cst_58 = arith.constant 2.000000e+00 : f32
    %269 = vector.broadcast %cst_58 : f32 to vector<8x32xf32>
    %270 = arith.mulf %269, %268 : vector<8x32xf32>
    %cst_59 = arith.constant 1.000000e+00 : f32
    %271 = vector.broadcast %cst_59 : f32 to vector<8x32xf32>
    %272 = arith.subf %270, %271 : vector<8x32xf32>
    %273 = vector.extract_strided_slice %265 {offsets = [0, 96], sizes = [8, 32], strides = [1, 1]} : vector<8x128xf32> to vector<8x32xf32>
    %274 = arith.mulf %267, %231 : vector<8x32xf32>
    %275 = arith.mulf %266, %272 : vector<8x32xf32>
    %276 = arith.addf %274, %275 : vector<8x32xf32>
    %277 = math.tanh %276 : vector<8x32xf32>
    %278 = arith.mulf %273, %277 : vector<8x32xf32>
    %279 = tpu.concatenate %233, %256 in 1 : vector<8x32xf32>, vector<8x32xf32> -> vector<8x64xf32>
    %280 = arith.truncf %279 : vector<8x64xf32> to vector<8x64xbf16>
    %cst_60 = arith.constant dense<0.000000e+00> : vector<8x128xf32>
    %281 = tpu.matmul %280, %7, %cst_60 {dimension_numbers = #tpu.dot_dimension_numbers<[1], [0], [0], [1], [0, 0, 1, 1], [], []>} : vector<8x64xbf16>, vector<64x128xbf16>, vector<8x128xf32> -> vector<8x128xf32>
    %282 = vector.broadcast %8 : vector<1x128xf32> to vector<8x128xf32>
    %283 = arith.addf %281, %282 : vector<8x128xf32>
    %284 = arith.negf %283 : vector<8x128xf32>
    %285 = math.exp %284 : vector<8x128xf32>
    %cst_61 = arith.constant 1.000000e+00 : f32
    %286 = vector.broadcast %cst_61 : f32 to vector<8x128xf32>
    %287 = arith.addf %286, %285 : vector<8x128xf32>
    %288 = arith.divf %286, %287 : vector<8x128xf32>
    %289 = vector.extract_strided_slice %288 {offsets = [0, 0], sizes = [8, 32], strides = [1, 1]} : vector<8x128xf32> to vector<8x32xf32>
    %290 = vector.extract_strided_slice %288 {offsets = [0, 32], sizes = [8, 32], strides = [1, 1]} : vector<8x128xf32> to vector<8x32xf32>
    %291 = vector.extract_strided_slice %288 {offsets = [0, 64], sizes = [8, 32], strides = [1, 1]} : vector<8x128xf32> to vector<8x32xf32>
    %cst_62 = arith.constant 2.000000e+00 : f32
    %292 = vector.broadcast %cst_62 : f32 to vector<8x32xf32>
    %293 = arith.mulf %292, %291 : vector<8x32xf32>
    %cst_63 = arith.constant 1.000000e+00 : f32
    %294 = vector.broadcast %cst_63 : f32 to vector<8x32xf32>
    %295 = arith.subf %293, %294 : vector<8x32xf32>
    %296 = vector.extract_strided_slice %288 {offsets = [0, 96], sizes = [8, 32], strides = [1, 1]} : vector<8x128xf32> to vector<8x32xf32>
    %297 = arith.mulf %290, %254 : vector<8x32xf32>
    %298 = arith.mulf %289, %295 : vector<8x32xf32>
    %299 = arith.addf %297, %298 : vector<8x32xf32>
    %300 = math.tanh %299 : vector<8x32xf32>
    %301 = arith.mulf %296, %300 : vector<8x32xf32>
    %302 = vector.extract_strided_slice %5 {offsets = [56, 0], sizes = [8, 128], strides = [1, 1]} : vector<64x128xf32> to vector<8x128xf32>
    %303 = arith.truncf %278 : vector<8x32xf32> to vector<8x32xbf16>
    %cst_64 = arith.constant dense<0.000000e+00> : vector<8x128xf32>
    %304 = tpu.matmul %303, %6, %cst_64 {dimension_numbers = #tpu.dot_dimension_numbers<[1], [0], [0], [1], [0, 0, 1, 1], [], []>} : vector<8x32xbf16>, vector<32x128xbf16>, vector<8x128xf32> -> vector<8x128xf32>
    %305 = arith.addf %302, %304 : vector<8x128xf32>
    %306 = arith.negf %305 : vector<8x128xf32>
    %307 = math.exp %306 : vector<8x128xf32>
    %cst_65 = arith.constant 1.000000e+00 : f32
    %308 = vector.broadcast %cst_65 : f32 to vector<8x128xf32>
    %309 = arith.addf %308, %307 : vector<8x128xf32>
    %310 = arith.divf %308, %309 : vector<8x128xf32>
    %311 = vector.extract_strided_slice %310 {offsets = [0, 0], sizes = [8, 32], strides = [1, 1]} : vector<8x128xf32> to vector<8x32xf32>
    %312 = vector.extract_strided_slice %310 {offsets = [0, 32], sizes = [8, 32], strides = [1, 1]} : vector<8x128xf32> to vector<8x32xf32>
    %313 = vector.extract_strided_slice %310 {offsets = [0, 64], sizes = [8, 32], strides = [1, 1]} : vector<8x128xf32> to vector<8x32xf32>
    %cst_66 = arith.constant 2.000000e+00 : f32
    %314 = vector.broadcast %cst_66 : f32 to vector<8x32xf32>
    %315 = arith.mulf %314, %313 : vector<8x32xf32>
    %cst_67 = arith.constant 1.000000e+00 : f32
    %316 = vector.broadcast %cst_67 : f32 to vector<8x32xf32>
    %317 = arith.subf %315, %316 : vector<8x32xf32>
    %318 = vector.extract_strided_slice %310 {offsets = [0, 96], sizes = [8, 32], strides = [1, 1]} : vector<8x128xf32> to vector<8x32xf32>
    %319 = arith.mulf %312, %276 : vector<8x32xf32>
    %320 = arith.mulf %311, %317 : vector<8x32xf32>
    %321 = arith.addf %319, %320 : vector<8x32xf32>
    %322 = math.tanh %321 : vector<8x32xf32>
    %323 = arith.mulf %318, %322 : vector<8x32xf32>
    %324 = tpu.concatenate %278, %301 in 1 : vector<8x32xf32>, vector<8x32xf32> -> vector<8x64xf32>
    %325 = arith.truncf %324 : vector<8x64xf32> to vector<8x64xbf16>
    %cst_68 = arith.constant dense<0.000000e+00> : vector<8x128xf32>
    %326 = tpu.matmul %325, %7, %cst_68 {dimension_numbers = #tpu.dot_dimension_numbers<[1], [0], [0], [1], [0, 0, 1, 1], [], []>} : vector<8x64xbf16>, vector<64x128xbf16>, vector<8x128xf32> -> vector<8x128xf32>
    %327 = vector.broadcast %8 : vector<1x128xf32> to vector<8x128xf32>
    %328 = arith.addf %326, %327 : vector<8x128xf32>
    %329 = arith.negf %328 : vector<8x128xf32>
    %330 = math.exp %329 : vector<8x128xf32>
    %cst_69 = arith.constant 1.000000e+00 : f32
    %331 = vector.broadcast %cst_69 : f32 to vector<8x128xf32>
    %332 = arith.addf %331, %330 : vector<8x128xf32>
    %333 = arith.divf %331, %332 : vector<8x128xf32>
    %334 = vector.extract_strided_slice %333 {offsets = [0, 0], sizes = [8, 32], strides = [1, 1]} : vector<8x128xf32> to vector<8x32xf32>
    %335 = vector.extract_strided_slice %333 {offsets = [0, 32], sizes = [8, 32], strides = [1, 1]} : vector<8x128xf32> to vector<8x32xf32>
    %336 = vector.extract_strided_slice %333 {offsets = [0, 64], sizes = [8, 32], strides = [1, 1]} : vector<8x128xf32> to vector<8x32xf32>
    %cst_70 = arith.constant 2.000000e+00 : f32
    %337 = vector.broadcast %cst_70 : f32 to vector<8x32xf32>
    %338 = arith.mulf %337, %336 : vector<8x32xf32>
    %cst_71 = arith.constant 1.000000e+00 : f32
    %339 = vector.broadcast %cst_71 : f32 to vector<8x32xf32>
    %340 = arith.subf %338, %339 : vector<8x32xf32>
    %341 = vector.extract_strided_slice %333 {offsets = [0, 96], sizes = [8, 32], strides = [1, 1]} : vector<8x128xf32> to vector<8x32xf32>
    %342 = arith.mulf %335, %299 : vector<8x32xf32>
    %343 = arith.mulf %334, %340 : vector<8x32xf32>
    %344 = arith.addf %342, %343 : vector<8x32xf32>
    %345 = math.tanh %344 : vector<8x32xf32>
    %346 = arith.mulf %341, %345 : vector<8x32xf32>
    %347 = tpu.concatenate %323, %346 in 1 : vector<8x32xf32>, vector<8x32xf32> -> vector<8x64xf32>
    %348 = arith.truncf %347 : vector<8x64xf32> to vector<8x64xbf16>
    %cst_72 = arith.constant dense<0.000000e+00> : vector<8x128xf32>
    %349 = tpu.matmul %348, %7, %cst_72 {dimension_numbers = #tpu.dot_dimension_numbers<[1], [0], [0], [1], [0, 0, 1, 1], [], []>} : vector<8x64xbf16>, vector<64x128xbf16>, vector<8x128xf32> -> vector<8x128xf32>
    %350 = vector.broadcast %8 : vector<1x128xf32> to vector<8x128xf32>
    %351 = arith.addf %349, %350 : vector<8x128xf32>
    %352 = arith.negf %351 : vector<8x128xf32>
    %353 = math.exp %352 : vector<8x128xf32>
    %cst_73 = arith.constant 1.000000e+00 : f32
    %354 = vector.broadcast %cst_73 : f32 to vector<8x128xf32>
    %355 = arith.addf %354, %353 : vector<8x128xf32>
    %356 = arith.divf %354, %355 : vector<8x128xf32>
    %357 = vector.extract_strided_slice %356 {offsets = [0, 0], sizes = [8, 32], strides = [1, 1]} : vector<8x128xf32> to vector<8x32xf32>
    %358 = vector.extract_strided_slice %356 {offsets = [0, 32], sizes = [8, 32], strides = [1, 1]} : vector<8x128xf32> to vector<8x32xf32>
    %359 = vector.extract_strided_slice %356 {offsets = [0, 64], sizes = [8, 32], strides = [1, 1]} : vector<8x128xf32> to vector<8x32xf32>
    %cst_74 = arith.constant 2.000000e+00 : f32
    %360 = vector.broadcast %cst_74 : f32 to vector<8x32xf32>
    %361 = arith.mulf %360, %359 : vector<8x32xf32>
    %cst_75 = arith.constant 1.000000e+00 : f32
    %362 = vector.broadcast %cst_75 : f32 to vector<8x32xf32>
    %363 = arith.subf %361, %362 : vector<8x32xf32>
    %364 = vector.extract_strided_slice %356 {offsets = [0, 96], sizes = [8, 32], strides = [1, 1]} : vector<8x128xf32> to vector<8x32xf32>
    %365 = arith.mulf %358, %344 : vector<8x32xf32>
    %366 = arith.mulf %357, %363 : vector<8x32xf32>
    %367 = arith.addf %365, %366 : vector<8x32xf32>
    %368 = math.tanh %367 : vector<8x32xf32>
    %369 = arith.mulf %364, %368 : vector<8x32xf32>
    %c0_76 = arith.constant 0 : index
    %c0_77 = arith.constant 0 : index
    %370 = vector.load %arg6[%c0_76, %c0_77] : memref<1x32xf32, #tpu.memory_space<vmem>>, vector<1x32xf32>
    %cst_78 = arith.constant dense<0.000000e+00> : vector<1x8xf32>
    %371 = tpu.matmul %370, %369, %cst_78 {dimension_numbers = #tpu.dot_dimension_numbers<[1], [1], [0], [0], [0, 0, 1, 0], [], []>} : vector<1x32xf32>, vector<8x32xf32>, vector<1x8xf32> -> vector<1x8xf32>
    %c0_79 = arith.constant 0 : index
    %c0_80 = arith.constant 0 : index
    %372 = vector.load %arg7[%c0_79, %c0_80] : memref<1x1xf32, #tpu.memory_space<vmem>>, vector<1x1xf32>
    %373 = vector.broadcast %372 : vector<1x1xf32> to vector<1x8xf32>
    %374 = arith.addf %371, %373 : vector<1x8xf32>
    %c0_81 = arith.constant 0 : index
    %c0_82 = arith.constant 0 : index
    %375 = vector.load %arg8[%c0_81, %c0_82] : memref<1x8xf32, #tpu.memory_space<vmem>>, vector<1x8xf32>
    tpu.vector_store %arg8[%c0_81, %c0_82], %374 {strides = array<i32>} : memref<1x8xf32, #tpu.memory_space<vmem>>, vector<1x8xf32>,
    return
  }
}

</mosaic_0001>

<llo_original>
// kernel: tpu_custom_call.1
$region0: #{tpu_custom_call.1}
  #allocation0 [shape = 'u32[]', space=smem, size = 0x4, offset = 0x4, fixed_abs, tag = 'smem constant byte address 0x4 - core index']
  #allocation1 [shape = 'u32[144,128]{1,0:T(1,128)}', space=vmem, size = 0x12000, scoped, tag = 'internal scratch']
  #allocation2 [shape = 'f32[1,1]{1,0:T(1,128)S(1)}', space=vmem, size = 0x200, scoped, tag = 'scoped memory for tpu_custom_call.1']
  %s0 = inlined_call_operand.vmem [shape: bf16[64,16], index: 0, kind: input, shape index: {}]
  %s1 = inlined_call_operand.hbm [shape: bf16[16,128], index: 1, kind: input, shape index: {}]
  %s2 = inlined_call_operand.vmem [shape: bf16[32,128], index: 2, kind: input, shape index: {}]
  %s3 = inlined_call_operand.vmem [shape: f32[1,128], index: 3, kind: input, shape index: {}]
  %s4 = inlined_call_operand.vmem [shape: bf16[64,128], index: 4, kind: input, shape index: {}]
  %s5 = inlined_call_operand.vmem [shape: f32[1,128], index: 5, kind: input, shape index: {}]
  %s6 = inlined_call_operand.vmem [shape: f32[1,32], index: 6, kind: input, shape index: {}]
  %s7 = inlined_call_operand.<no memory space> [shape: f32[1,1], index: 7, kind: input, shape index: {}]
  %s8 = inlined_call_operand.hbm [shape: f32[1,8], index: 8, kind: output, shape index: {}]
  %s9 = sld [smem:[#allocation0]]
  $region46: #{tpu_custom_call.1} parent=0
    _
  %s11 = ssub.s32 1, %s9
  %s12 = scalar_select 0, %s11, %s9
  %v13 = vstv %s7
  %14 = vst [vmem:[#allocation2] sm:$0x1] %v13
  $region1: #{tpu_custom_call.1} parent=0
    #allocation3 [shape = 'u8[4096]{0}', space=vmem, size = 0x1000, scoped, tag = 'input window, operand 1, single buffered']
    #allocation4 [shape = 's32[1]{0}', space=sflag, size = 0x4, scoped, tag = 'scoped memory for tpu_custom_call.1']
    #allocation5 [shape = 's32[1]{0}', space=sflag, size = 0x4, scoped, tag = 'scoped memory for tpu_custom_call.1']
    #allocation6 [shape = 'u8[512]{0}', space=vmem, size = 0x400, scoped, tag = 'output window, operand 0, single buffered']
    %15 = vsyncpa [#allocation4], 0
    %16 = vsyncpa [#allocation5], 0
    // Predicated region
    $region2: #{tpu_custom_call.1} parent=1 // pred_check
      _
    $region3: #{tpu_custom_call.1} parent=1 // pred_check_branch
      %18 = sbr.rel (0) target = $region5
    $region4: #{tpu_custom_call.1} parent=1 // pred_region
      _
    $region5: #{tpu_custom_call.1} parent=1 // pred_fallthru
      _
    // Predicated region
    $region6: #{tpu_custom_call.1} parent=1 // pred_check
      _
    $region7: #{tpu_custom_call.1} parent=1 // pred_check_branch
      %20 = sbr.rel (0) target = $region9
    $region8: #{tpu_custom_call.1} parent=1 // pred_region
      %s22 = ssub.s32 128, 128
      %23 = vsyncadd [#allocation4], %s22
      %s24 = sshll.u32 [#allocation3], 4
      %s25 = int_to_ptr.vmem [resolvable:$true] %s24
      %30 = dma.hbm_to_vmem [thread:$0]  %s1, 128, %s25, [#allocation4], 64, 64, 4
    $region9: #{tpu_custom_call.1} parent=1 // pred_fallthru
      _
    // Predicated region
    $region10: #{tpu_custom_call.1} parent=1 // pred_check
      _
    $region11: #{tpu_custom_call.1} parent=1 // pred_check_branch
      %32 = sbr.rel (0) target = $region13
    $region12: #{tpu_custom_call.1} parent=1 // pred_region
      _
    $region13: #{tpu_custom_call.1} parent=1 // pred_fallthru
      _
    // Predicated region
    $region14: #{tpu_custom_call.1} parent=1 // pred_check
      _
    $region15: #{tpu_custom_call.1} parent=1 // pred_check_branch
      %34 = sbr.rel (0) target = $region17
    $region16: #{tpu_custom_call.1} parent=1 // pred_region
      _
    $region17: #{tpu_custom_call.1} parent=1 // pred_fallthru
      _
    // Predicated region
    $region18: #{tpu_custom_call.1} parent=1 // pred_check
      _
    $region19: #{tpu_custom_call.1} parent=1 // pred_check_branch
      %36 = sbr.rel (0) target = $region21
    $region20: #{tpu_custom_call.1} parent=1 // pred_region
      _
    $region21: #{tpu_custom_call.1} parent=1 // pred_fallthru
      _
    // Predicated region
    $region22: #{tpu_custom_call.1} parent=1 // pred_check
      _
    $region23: #{tpu_custom_call.1} parent=1 // pred_check_branch
      %38 = sbr.rel (0) target = $region25
    $region24: #{tpu_custom_call.1} parent=1 // pred_region
      _
    $region25: #{tpu_custom_call.1} parent=1 // pred_fallthru
      _
    // Predicated region
    $region26: #{tpu_custom_call.1} parent=1 // pred_check
      _
    $region27: #{tpu_custom_call.1} parent=1 // pred_check_branch
      %40 = sbr.rel (0) target = $region29
    $region28: #{tpu_custom_call.1} parent=1 // pred_region
      _
    $region29: #{tpu_custom_call.1} parent=1 // pred_fallthru
      _
    // Predicated region
    $region30: #{tpu_custom_call.1} parent=1 // pred_check
      _
    $region31: #{tpu_custom_call.1} parent=1 // pred_check_branch
      %42 = sbr.rel (0) target = $region33
    $region32: #{tpu_custom_call.1} parent=1 // pred_region
      _
    $region33: #{tpu_custom_call.1} parent=1 // pred_fallthru
      _
    // Predicated region
    $region34: #{tpu_custom_call.1} parent=1 // pred_check
      _
    $region35: #{tpu_custom_call.1} parent=1 // pred_check_branch
      %44 = sbr.rel (0) target = $region37
    $region36: #{tpu_custom_call.1} parent=1 // pred_region
      %45 = dma.done [#allocation4], 128
    $region37: #{tpu_custom_call.1} parent=1 // pred_fallthru
      _
    %v47 = vld [vmem:[%s0] sm:$0xf]
    %v48 = vld [vmem:[%s0 + $0x4] sm:$0xf]
    %v49 = vld [vmem:[%s0 + $0x8] sm:$0xf]
    %v50 = vld [vmem:[%s0 + $0xc] sm:$0xf]
    %v51 = vld [vmem:[%s0 + $0x10] sm:$0xf]
    %v52 = vld [vmem:[%s0 + $0x14] sm:$0xf]
    %v53 = vld [vmem:[%s0 + $0x18] sm:$0xf]
    %v54 = vld [vmem:[%s0 + $0x1c] sm:$0xf]
    %v55 = vld [vmem:[#allocation3] sm:$0xf]
    %v56 = vld [vmem:[#allocation3 + $0x4] sm:$0xf]
    %v57 = vld [vmem:[%s3] sm:$0x1]
    %v59 = vlaneseq
    %v60 = vshrl.u32 %v59, 7
    %v61 = vsub.s32 0, %v60
    %v62 = vrot.slane %v57, %v61
    %v72 = vunpack.c.l.b16 %v47
    %v73 = vunpack.c.l.b16 %v48
    %v74 = vunpack.c.l.b16 %v49
    %v75 = vunpack.c.l.b16 %v50
    %v76 = vunpack.c.l.b16 %v51
    %v77 = vunpack.c.l.b16 %v52
    %v78 = vunpack.c.l.b16 %v53
    %v79 = vunpack.c.l.b16 %v54
    %v80 = vpack.c.b16 %v73, %v72
    %v81 = vpack.c.b16 %v75, %v74
    %v82 = vpack.c.b16 %v77, %v76
    %v83 = vpack.c.b16 %v79, %v78
    %v86 = vunpack.c.l.b16 %v55
    %v87 = vunpack.c.l.b16 %v56
    %v88 = vpack.c.b16 %v87, %v86
    %vm90 = vcmask 130048
    %v92 = vsel %vm90, %v80, 0
    %v95 = vsel %vm90, %v81, 0
    %v98 = vsel %vm90, %v82, 0
    %v101 = vsel %vm90, %v83, 0
    %103 = vmatprep.subr.bf16.mxu0 0
    %104 = vmatpush1.bf16.msra.mxu0 0
    %105 = vmatprep.subr.bf16.mxu0 0
    %106 = vmatpush1.bf16.msra.mxu0 0
    %107 = vmatprep.subr.bf16.mxu0 0
    %108 = vmatpush1.bf16.msra.mxu0 0
    %109 = vmatprep.subr.bf16.mxu0 0
    %110 = vmatpush1.bf16.msra.mxu0 0
    %111 = vmatprep.subr.bf16.mxu0 0
    %112 = vmatpush1.bf16.msra.mxu0 0
    %113 = vmatprep.subr.bf16.mxu0 0
    %114 = vmatpush1.bf16.msra.mxu0 0
    %115 = vmatprep.subr.bf16.mxu0 0
    %116 = vmatpush1.bf16.msra.mxu0 0
    %117 = vmatprep.subr.bf16.mxu0 0
    %118 = vmatpush1.bf16.msra.mxu0 %v88
    %119 = vmatprep.subr.bf16.mxu0 0
    %120 = vmatpush2.bf16.msra.mxu0 0
    %121 = vmatprep.subr.bf16.mxu0 0
    %122 = vmatpush2.bf16.msra.mxu0 0
    %123 = vmatprep.subr.bf16.mxu0 0
    %124 = vmatpush2.bf16.msra.mxu0 0
    %125 = vmatprep.subr.bf16.mxu0 0
    %126 = vmatpush2.bf16.msra.mxu0 0
    %127 = vmatprep.subr.bf16.mxu0 0
    %128 = vmatpush2.bf16.msra.mxu0 0
    %129 = vmatprep.subr.bf16.mxu0 0
    %130 = vmatpush2.bf16.msra.mxu0 0
    %131 = vmatprep.subr.bf16.mxu0 0
    %132 = vmatpush2.bf16.msra.mxu0 0
    %133 = vmatprep.subr.bf16.mxu0 0
    %134 = vmatpush2.bf16.msra.mxu0 0
    %135 = vmatprep.mubr.bf16.mxu0 0
    %136 = vmatmul.mubr.bf16.gmra.mxu0 %v92
    %v137 = vpop.f32.mrf.mxu0
    %v138 = vadd.f32 %v62, %v137
    %v139 = vpop.f32.mrf.mxu0
    %v140 = vpop.f32.mrf.mxu0
    %v141 = vadd.f32 %v62, %v140
    %v142 = vpop.f32.mrf.mxu0
    %143 = vmatprep.mubr.bf16.mxu0 0
    %144 = vmatmul.mubr.bf16.gmra.mxu0 %v95
    %v145 = vpop.f32.mrf.mxu0
    %v146 = vadd.f32 %v62, %v145
    %v147 = vpop.f32.mrf.mxu0
    %v148 = vpop.f32.mrf.mxu0
    %v149 = vadd.f32 %v62, %v148
    %v150 = vpop.f32.mrf.mxu0
    %151 = vmatprep.mubr.bf16.mxu0 0
    %152 = vmatmul.mubr.bf16.gmra.mxu0 %v98
    %v153 = vpop.f32.mrf.mxu0
    %v154 = vadd.f32 %v62, %v153
    %v155 = vpop.f32.mrf.mxu0
    %v156 = vpop.f32.mrf.mxu0
    %v157 = vadd.f32 %v62, %v156
    %v158 = vpop.f32.mrf.mxu0
    %159 = vmatprep.mubr.bf16.mxu0 0
    %160 = vmatmul.mubr.bf16.gmra.mxu0 %v101
    %v161 = vpop.f32.mrf.mxu0
    %v162 = vadd.f32 %v62, %v161
    %v163 = vpop.f32.mrf.mxu0
    %v164 = vpop.f32.mrf.mxu0
    %v165 = vadd.f32 %v62, %v164
    %v166 = vpop.f32.mrf.mxu0
    %167 = vdwg.mxu0
    %v168 = vld [vmem:[%s2] sm:$0xf]
    %v169 = vld [vmem:[%s2 + $0x4] sm:$0xf]
    %v170 = vld [vmem:[%s2 + $0x8] sm:$0xf]
    %v171 = vld [vmem:[%s2 + $0xc] sm:$0xf]
    %v172 = vld [vmem:[%s4] sm:$0xf]
    %v173 = vld [vmem:[%s4 + $0x4] sm:$0xf]
    %v174 = vld [vmem:[%s4 + $0x8] sm:$0xf]
    %v175 = vld [vmem:[%s4 + $0xc] sm:$0xf]
    %v176 = vld [vmem:[%s4 + $0x10] sm:$0xf]
    %v177 = vld [vmem:[%s4 + $0x14] sm:$0xf]
    %v178 = vld [vmem:[%s4 + $0x18] sm:$0xf]
    %v179 = vld [vmem:[%s4 + $0x1c] sm:$0xf]
    %v180 = vld [vmem:[%s5] sm:$0x1]
    %v185 = vunpack.c.l.b16 %v168
    %v186 = vunpack.c.l.b16 %v169
    %v187 = vunpack.c.l.b16 %v170
    %v188 = vunpack.c.l.b16 %v171
    %v189 = vpack.c.b16 %v186, %v185
    %v190 = vpack.c.b16 %v188, %v187
    %vm193 = vcmask 261120
    %v195 = vsel %vm193, 0, 0
    %197 = vmatprep.subr.bf16.mxu0 0
    %198 = vmatpush1.bf16.msra.mxu0 0
    %199 = vmatprep.subr.bf16.mxu0 0
    %200 = vmatpush1.bf16.msra.mxu0 0
    %201 = vmatprep.subr.bf16.mxu0 0
    %202 = vmatpush1.bf16.msra.mxu0 0
    %203 = vmatprep.subr.bf16.mxu0 0
    %204 = vmatpush1.bf16.msra.mxu0 0
    %205 = vmatprep.subr.bf16.mxu0 0
    %206 = vmatpush1.bf16.msra.mxu0 0
    %207 = vmatprep.subr.bf16.mxu0 0
    %208 = vmatpush1.bf16.msra.mxu0 0
    %209 = vmatprep.subr.bf16.mxu0 0
    %210 = vmatpush1.bf16.msra.mxu0 %v190
    %211 = vmatprep.subr.bf16.mxu0 0
    %212 = vmatpush1.bf16.msra.mxu0 %v189
    %213 = vmatprep.subr.bf16.mxu0 0
    %214 = vmatpush2.bf16.msra.mxu0 0
    %215 = vmatprep.subr.bf16.mxu0 0
    %216 = vmatpush2.bf16.msra.mxu0 0
    %217 = vmatprep.subr.bf16.mxu0 0
    %218 = vmatpush2.bf16.msra.mxu0 0
    %219 = vmatprep.subr.bf16.mxu0 0
    %220 = vmatpush2.bf16.msra.mxu0 0
    %221 = vmatprep.subr.bf16.mxu0 0
    %222 = vmatpush2.bf16.msra.mxu0 0
    %223 = vmatprep.subr.bf16.mxu0 0
    %224 = vmatpush2.bf16.msra.mxu0 0
    %225 = vmatprep.subr.bf16.mxu0 0
    %226 = vmatpush2.bf16.msra.mxu0 0
    %227 = vmatprep.subr.bf16.mxu0 0
    %228 = vmatpush2.bf16.msra.mxu0 0
    %229 = vmatprep.mubr.bf16.mxu0 0
    %230 = vmatmul.mubr.bf16.gmra.mxu0 %v195
    %v231 = vpop.f32.mrf.mxu0
    %v232 = vadd.f32 0.0, %v231
    %v233 = vpop.f32.mrf.mxu0
    %v234 = vpop.f32.mrf.mxu0
    %v235 = vpop.f32.mrf.mxu0
    %236 = vdwg.mxu0
    %v237 = vadd.f32 %v138, %v232
    %v238 = vxor.u32 %v237, 2147483648
    %v239 = vmul.f32 %v238, 1.442695
    %v240 = vpow.pop %v239
    %v241 = vadd.f32 %v240, 1.0
    %v242 = vrcp.pop %v241
    %v243 = vmul.f32 1.0, %v242
    %v244 = vmul.f32 %v243, 2.0
    %v245 = vsub.f32 %v244, 1.0
    %v246 = vmul.f32 %v243, 0.0
    %248 = vrot.lane.b32.xlu0 %v245, 64
    %v249 = vpop.permute.xlu0 %248
    %v251 = vmul.f32 %v243, %v249
    %253 = vrot.lane.b32.xlu0 %v251, 32
    %v254 = vpop.permute.xlu0 %253
    %v256 = vadd.f32 %v246, %v254
    %v257 = vtanh.pop %v256
    %259 = vrot.lane.b32.xlu0 %v257, 64
    %v260 = vpop.permute.xlu0 %259
    %v262 = vmul.f32 %v243, %v260
    %v263 = vpack.c.bf16 %v262, %v262
    %265 = vrot.lane.b32.xlu0 %v263, 32
    %v266 = vpop.permute.xlu0 %265
    %v268 = vsel %vm193, %v266, 0
    %270 = vmatprep.subr.bf16.mxu0 0
    %271 = vmatpush1.bf16.msra.mxu0 0
    %272 = vmatprep.subr.bf16.mxu0 0
    %273 = vmatpush1.bf16.msra.mxu0 0
    %274 = vmatprep.subr.bf16.mxu0 0
    %275 = vmatpush1.bf16.msra.mxu0 0
    %276 = vmatprep.subr.bf16.mxu0 0
    %277 = vmatpush1.bf16.msra.mxu0 0
    %278 = vmatprep.subr.bf16.mxu0 0
    %279 = vmatpush1.bf16.msra.mxu0 0
    %280 = vmatprep.subr.bf16.mxu0 0
    %281 = vmatpush1.bf16.msra.mxu0 0
    %282 = vmatprep.subr.bf16.mxu0 0
    %283 = vmatpush1.bf16.msra.mxu0 %v190
    %284 = vmatprep.subr.bf16.mxu0 0
    %285 = vmatpush1.bf16.msra.mxu0 %v189
    %286 = vmatprep.subr.bf16.mxu0 0
    %287 = vmatpush2.bf16.msra.mxu0 0
    %288 = vmatprep.subr.bf16.mxu0 0
    %289 = vmatpush2.bf16.msra.mxu0 0
    %290 = vmatprep.subr.bf16.mxu0 0
    %291 = vmatpush2.bf16.msra.mxu0 0
    %292 = vmatprep.subr.bf16.mxu0 0
    %293 = vmatpush2.bf16.msra.mxu0 0
    %294 = vmatprep.subr.bf16.mxu0 0
    %295 = vmatpush2.bf16.msra.mxu0 0
    %296 = vmatprep.subr.bf16.mxu0 0
    %297 = vmatpush2.bf16.msra.mxu0 0
    %298 = vmatprep.subr.bf16.mxu0 0
    %299 = vmatpush2.bf16.msra.mxu0 0
    %300 = vmatprep.subr.bf16.mxu0 0
    %301 = vmatpush2.bf16.msra.mxu0 0
    %302 = vmatprep.mubr.bf16.mxu0 0
    %303 = vmatmul.mubr.bf16.gmra.mxu0 %v268
    %v304 = vpop.f32.mrf.mxu0
    %v305 = vadd.f32 0.0, %v304
    %v306 = vpop.f32.mrf.mxu0
    %v307 = vpop.f32.mrf.mxu0
    %v308 = vpop.f32.mrf.mxu0
    %309 = vdwg.mxu0
    %v310 = vadd.f32 %v141, %v305
    %v311 = vxor.u32 %v310, 2147483648
    %v312 = vmul.f32 %v311, 1.442695
    %v313 = vpow.pop %v312
    %v314 = vadd.f32 %v313, 1.0
    %v315 = vrcp.pop %v314
    %v316 = vmul.f32 1.0, %v315
    %v317 = vmul.f32 %v316, 2.0
    %v318 = vsub.f32 %v317, 1.0
    %v319 = vmul.f32 %v316, %v256
    %321 = vrot.lane.b32.xlu0 %v318, 64
    %v322 = vpop.permute.xlu0 %321
    %v324 = vmul.f32 %v316, %v322
    %326 = vrot.lane.b32.xlu0 %v324, 32
    %v327 = vpop.permute.xlu0 %326
    %v329 = vadd.f32 %v319, %v327
    %v330 = vtanh.pop %v329
    %332 = vrot.lane.b32.xlu0 %v330, 64
    %v333 = vpop.permute.xlu0 %332
    %v335 = vmul.f32 %v316, %v333
    %337 = vrot.lane.b32.xlu0 %v262, 32
    %v338 = vpop.permute.xlu0 %337
    %v340 = vsel %vm193, %v338, 0.0
    %v341 = vpack.c.bf16 %v340, %v340
    %v343 = vlaneseq
    %v344 = vshrl.u32 %v343, 7
    %v345 = vsub.s32 0, %v344
    %v346 = vrot.slane %v180, %v345
    %v356 = vunpack.c.l.b16 %v172
    %v357 = vunpack.c.l.b16 %v173
    %v358 = vunpack.c.l.b16 %v174
    %v359 = vunpack.c.l.b16 %v175
    %v360 = vunpack.c.l.b16 %v176
    %v361 = vunpack.c.l.b16 %v177
    %v362 = vunpack.c.l.b16 %v178
    %v363 = vunpack.c.l.b16 %v179
    %v364 = vpack.c.b16 %v357, %v356
    %v365 = vpack.c.b16 %v359, %v358
    %v366 = vpack.c.b16 %v361, %v360
    %v367 = vpack.c.b16 %v363, %v362
    %vm372 = vcmask 523264
    %v374 = vsel %vm372, %v341, 0
    %376 = vmatprep.subr.bf16.mxu0 0
    %377 = vmatpush1.bf16.msra.mxu0 0
    %378 = vmatprep.subr.bf16.mxu0 0
    %379 = vmatpush1.bf16.msra.mxu0 0
    %380 = vmatprep.subr.bf16.mxu0 0
    %381 = vmatpush1.bf16.msra.mxu0 0
    %382 = vmatprep.subr.bf16.mxu0 0
    %383 = vmatpush1.bf16.msra.mxu0 0
    %384 = vmatprep.subr.bf16.mxu0 0
    %385 = vmatpush1.bf16.msra.mxu0 %v367
    %386 = vmatprep.subr.bf16.mxu0 0
    %387 = vmatpush1.bf16.msra.mxu0 %v366
    %388 = vmatprep.subr.bf16.mxu0 0
    %389 = vmatpush1.bf16.msra.mxu0 %v365
    %390 = vmatprep.subr.bf16.mxu0 0
    %391 = vmatpush1.bf16.msra.mxu0 %v364
    %392 = vmatprep.subr.bf16.mxu0 0
    %393 = vmatpush2.bf16.msra.mxu0 0
    %394 = vmatprep.subr.bf16.mxu0 0
    %395 = vmatpush2.bf16.msra.mxu0 0
    %396 = vmatprep.subr.bf16.mxu0 0
    %397 = vmatpush2.bf16.msra.mxu0 0
    %398 = vmatprep.subr.bf16.mxu0 0
    %399 = vmatpush2.bf16.msra.mxu0 0
    %400 = vmatprep.subr.bf16.mxu0 0
    %401 = vmatpush2.bf16.msra.mxu0 0
    %402 = vmatprep.subr.bf16.mxu0 0
    %403 = vmatpush2.bf16.msra.mxu0 0
    %404 = vmatprep.subr.bf16.mxu0 0
    %405 = vmatpush2.bf16.msra.mxu0 0
    %406 = vmatprep.subr.bf16.mxu0 0
    %407 = vmatpush2.bf16.msra.mxu0 0
    %408 = vmatprep.mubr.bf16.mxu0 0
    %409 = vmatmul.mubr.bf16.gmra.mxu0 %v374
    %v410 = vpop.f32.mrf.mxu0
    %v411 = vadd.f32 %v346, %v410
    %v412 = vpop.f32.mrf.mxu0
    %v413 = vpop.f32.mrf.mxu0
    %v414 = vpop.f32.mrf.mxu0
    %415 = vdwg.mxu0
    %v416 = vxor.u32 %v411, 2147483648
    %v417 = vmul.f32 %v416, 1.442695
    %v418 = vpow.pop %v417
    %v419 = vadd.f32 %v418, 1.0
    %v420 = vrcp.pop %v419
    %v421 = vmul.f32 1.0, %v420
    %v422 = vmul.f32 %v421, 2.0
    %v423 = vsub.f32 %v422, 1.0
    %v424 = vmul.f32 %v421, 0.0
    %426 = vrot.lane.b32.xlu0 %v423, 64
    %v427 = vpop.permute.xlu0 %426
    %v429 = vmul.f32 %v421, %v427
    %431 = vrot.lane.b32.xlu0 %v429, 32
    %v432 = vpop.permute.xlu0 %431
    %v434 = vadd.f32 %v424, %v432
    %v435 = vtanh.pop %v434
    %437 = vrot.lane.b32.xlu0 %v435, 64
    %v438 = vpop.permute.xlu0 %437
    %v440 = vmul.f32 %v421, %v438
    %v441 = vpack.c.bf16 %v335, %v335
    %443 = vrot.lane.b32.xlu0 %v441, 32
    %v444 = vpop.permute.xlu0 %443
    %v446 = vsel %vm193, %v444, 0
    %448 = vmatprep.subr.bf16.mxu0 0
    %449 = vmatpush1.bf16.msra.mxu0 0
    %450 = vmatprep.subr.bf16.mxu0 0
    %451 = vmatpush1.bf16.msra.mxu0 0
    %452 = vmatprep.subr.bf16.mxu0 0
    %453 = vmatpush1.bf16.msra.mxu0 0
    %454 = vmatprep.subr.bf16.mxu0 0
    %455 = vmatpush1.bf16.msra.mxu0 0
    %456 = vmatprep.subr.bf16.mxu0 0
    %457 = vmatpush1.bf16.msra.mxu0 0
    %458 = vmatprep.subr.bf16.mxu0 0
    %459 = vmatpush1.bf16.msra.mxu0 0
    %460 = vmatprep.subr.bf16.mxu0 0
    %461 = vmatpush1.bf16.msra.mxu0 %v190
    %462 = vmatprep.subr.bf16.mxu0 0
    %463 = vmatpush1.bf16.msra.mxu0 %v189
    %464 = vmatprep.subr.bf16.mxu0 0
    %465 = vmatpush2.bf16.msra.mxu0 0
    %466 = vmatprep.subr.bf16.mxu0 0
    %467 = vmatpush2.bf16.msra.mxu0 0
    %468 = vmatprep.subr.bf16.mxu0 0
    %469 = vmatpush2.bf16.msra.mxu0 0
    %470 = vmatprep.subr.bf16.mxu0 0
    %471 = vmatpush2.bf16.msra.mxu0 0
    %472 = vmatprep.subr.bf16.mxu0 0
    %473 = vmatpush2.bf16.msra.mxu0 0
    %474 = vmatprep.subr.bf16.mxu0 0
    %475 = vmatpush2.bf16.msra.mxu0 0
    %476 = vmatprep.subr.bf16.mxu0 0
    %477 = vmatpush2.bf16.msra.mxu0 0
    %478 = vmatprep.subr.bf16.mxu0 0
    %479 = vmatpush2.bf16.msra.mxu0 0
    %480 = vmatprep.mubr.bf16.mxu0 0
    %481 = vmatmul.mubr.bf16.gmra.mxu0 %v446
    %v482 = vpop.f32.mrf.mxu0
    %v483 = vadd.f32 0.0, %v482
    %v484 = vpop.f32.mrf.mxu0
    %v485 = vpop.f32.mrf.mxu0
    %v486 = vpop.f32.mrf.mxu0
    %487 = vdwg.mxu0
    %v488 = vadd.f32 %v146, %v483
    %v489 = vxor.u32 %v488, 2147483648
    %v490 = vmul.f32 %v489, 1.442695
    %v491 = vpow.pop %v490
    %v492 = vadd.f32 %v491, 1.0
    %v493 = vrcp.pop %v492
    %v494 = vmul.f32 1.0, %v493
    %v495 = vmul.f32 %v494, 2.0
    %v496 = vsub.f32 %v495, 1.0
    %v497 = vmul.f32 %v494, %v329
    %499 = vrot.lane.b32.xlu0 %v496, 64
    %v500 = vpop.permute.xlu0 %499
    %v502 = vmul.f32 %v494, %v500
    %504 = vrot.lane.b32.xlu0 %v502, 32
    %v505 = vpop.permute.xlu0 %504
    %v507 = vadd.f32 %v497, %v505
    %v508 = vtanh.pop %v507
    %510 = vrot.lane.b32.xlu0 %v508, 64
    %v511 = vpop.permute.xlu0 %510
    %v513 = vmul.f32 %v494, %v511
    %515 = vrot.lane.b32.xlu0 %v335, 32
    %v516 = vpop.permute.xlu0 %515
    %519 = vrot.lane.b32.xlu0 %v440, 64
    %v520 = vpop.permute.xlu0 %519
    %v522 = vsel %vm193, %v516, %v520
    %v523 = vpack.c.bf16 %v522, %v522
    %v525 = vsel %vm372, %v523, 0
    %527 = vmatprep.subr.bf16.mxu0 0
    %528 = vmatpush1.bf16.msra.mxu0 0
    %529 = vmatprep.subr.bf16.mxu0 0
    %530 = vmatpush1.bf16.msra.mxu0 0
    %531 = vmatprep.subr.bf16.mxu0 0
    %532 = vmatpush1.bf16.msra.mxu0 0
    %533 = vmatprep.subr.bf16.mxu0 0
    %534 = vmatpush1.bf16.msra.mxu0 0
    %535 = vmatprep.subr.bf16.mxu0 0
    %536 = vmatpush1.bf16.msra.mxu0 %v367
    %537 = vmatprep.subr.bf16.mxu0 0
    %538 = vmatpush1.bf16.msra.mxu0 %v366
    %539 = vmatprep.subr.bf16.mxu0 0
    %540 = vmatpush1.bf16.msra.mxu0 %v365
    %541 = vmatprep.subr.bf16.mxu0 0
    %542 = vmatpush1.bf16.msra.mxu0 %v364
    %543 = vmatprep.subr.bf16.mxu0 0
    %544 = vmatpush2.bf16.msra.mxu0 0
    %545 = vmatprep.subr.bf16.mxu0 0
    %546 = vmatpush2.bf16.msra.mxu0 0
    %547 = vmatprep.subr.bf16.mxu0 0
    %548 = vmatpush2.bf16.msra.mxu0 0
    %549 = vmatprep.subr.bf16.mxu0 0
    %550 = vmatpush2.bf16.msra.mxu0 0
    %551 = vmatprep.subr.bf16.mxu0 0
    %552 = vmatpush2.bf16.msra.mxu0 0
    %553 = vmatprep.subr.bf16.mxu0 0
    %554 = vmatpush2.bf16.msra.mxu0 0
    %555 = vmatprep.subr.bf16.mxu0 0
    %556 = vmatpush2.bf16.msra.mxu0 0
    %557 = vmatprep.subr.bf16.mxu0 0
    %558 = vmatpush2.bf16.msra.mxu0 0
    %559 = vmatprep.mubr.bf16.mxu0 0
    %560 = vmatmul.mubr.bf16.gmra.mxu0 %v525
    %v561 = vpop.f32.mrf.mxu0
    %v562 = vadd.f32 %v346, %v561
    %v563 = vpop.f32.mrf.mxu0
    %v564 = vpop.f32.mrf.mxu0
    %v565 = vpop.f32.mrf.mxu0
    %566 = vdwg.mxu0
    %v567 = vxor.u32 %v562, 2147483648
    %v568 = vmul.f32 %v567, 1.442695
    %v569 = vpow.pop %v568
    %v570 = vadd.f32 %v569, 1.0
    %v571 = vrcp.pop %v570
    %v572 = vmul.f32 1.0, %v571
    %v573 = vmul.f32 %v572, 2.0
    %v574 = vsub.f32 %v573, 1.0
    %v575 = vmul.f32 %v572, %v434
    %577 = vrot.lane.b32.xlu0 %v574, 64
    %v578 = vpop.permute.xlu0 %577
    %v580 = vmul.f32 %v572, %v578
    %582 = vrot.lane.b32.xlu0 %v580, 32
    %v583 = vpop.permute.xlu0 %582
    %v585 = vadd.f32 %v575, %v583
    %v586 = vtanh.pop %v585
    %588 = vrot.lane.b32.xlu0 %v586, 64
    %v589 = vpop.permute.xlu0 %588
    %v591 = vmul.f32 %v572, %v589
    %v592 = vpack.c.bf16 %v513, %v513
    %594 = vrot.lane.b32.xlu0 %v592, 32
    %v595 = vpop.permute.xlu0 %594
    %v597 = vsel %vm193, %v595, 0
    %599 = vmatprep.subr.bf16.mxu0 0
    %600 = vmatpush1.bf16.msra.mxu0 0
    %601 = vmatprep.subr.bf16.mxu0 0
    %602 = vmatpush1.bf16.msra.mxu0 0
    %603 = vmatprep.subr.bf16.mxu0 0
    %604 = vmatpush1.bf16.msra.mxu0 0
    %605 = vmatprep.subr.bf16.mxu0 0
    %606 = vmatpush1.bf16.msra.mxu0 0
    %607 = vmatprep.subr.bf16.mxu0 0
    %608 = vmatpush1.bf16.msra.mxu0 0
    %609 = vmatprep.subr.bf16.mxu0 0
    %610 = vmatpush1.bf16.msra.mxu0 0
    %611 = vmatprep.subr.bf16.mxu0 0
    %612 = vmatpush1.bf16.msra.mxu0 %v190
    %613 = vmatprep.subr.bf16.mxu0 0
    %614 = vmatpush1.bf16.msra.mxu0 %v189
    %615 = vmatprep.subr.bf16.mxu0 0
    %616 = vmatpush2.bf16.msra.mxu0 0
    %617 = vmatprep.subr.bf16.mxu0 0
    %618 = vmatpush2.bf16.msra.mxu0 0
    %619 = vmatprep.subr.bf16.mxu0 0
    %620 = vmatpush2.bf16.msra.mxu0 0
    %621 = vmatprep.subr.bf16.mxu0 0
    %622 = vmatpush2.bf16.msra.mxu0 0
    %623 = vmatprep.subr.bf16.mxu0 0
    %624 = vmatpush2.bf16.msra.mxu0 0
    %625 = vmatprep.subr.bf16.mxu0 0
    %626 = vmatpush2.bf16.msra.mxu0 0
    %627 = vmatprep.subr.bf16.mxu0 0
    %628 = vmatpush2.bf16.msra.mxu0 0
    %629 = vmatprep.subr.bf16.mxu0 0
    %630 = vmatpush2.bf16.msra.mxu0 0
    %631 = vmatprep.mubr.bf16.mxu0 0
    %632 = vmatmul.mubr.bf16.gmra.mxu0 %v597
    %v633 = vpop.f32.mrf.mxu0
    %v634 = vadd.f32 0.0, %v633
    %v635 = vpop.f32.mrf.mxu0
    %v636 = vpop.f32.mrf.mxu0
    %v637 = vpop.f32.mrf.mxu0
    %638 = vdwg.mxu0
    %v639 = vadd.f32 %v149, %v634
    %v640 = vxor.u32 %v639, 2147483648
    %v641 = vmul.f32 %v640, 1.442695
    %v642 = vpow.pop %v641
    %v643 = vadd.f32 %v642, 1.0
    %v644 = vrcp.pop %v643
    %v645 = vmul.f32 1.0, %v644
    %v646 = vmul.f32 %v645, 2.0
    %v647 = vsub.f32 %v646, 1.0
    %v648 = vmul.f32 %v645, %v507
    %650 = vrot.lane.b32.xlu0 %v647, 64
    %v651 = vpop.permute.xlu0 %650
    %v653 = vmul.f32 %v645, %v651
    %655 = vrot.lane.b32.xlu0 %v653, 32
    %v656 = vpop.permute.xlu0 %655
    %v658 = vadd.f32 %v648, %v656
    %v659 = vtanh.pop %v658
    %661 = vrot.lane.b32.xlu0 %v659, 64
    %v662 = vpop.permute.xlu0 %661
    %v664 = vmul.f32 %v645, %v662
    %666 = vrot.lane.b32.xlu0 %v513, 32
    %v667 = vpop.permute.xlu0 %666
    %670 = vrot.lane.b32.xlu0 %v591, 64
    %v671 = vpop.permute.xlu0 %670
    %v673 = vsel %vm193, %v667, %v671
    %v674 = vpack.c.bf16 %v673, %v673
    %v676 = vsel %vm372, %v674, 0
    %678 = vmatprep.subr.bf16.mxu0 0
    %679 = vmatpush1.bf16.msra.mxu0 0
    %680 = vmatprep.subr.bf16.mxu0 0
    %681 = vmatpush1.bf16.msra.mxu0 0
    %682 = vmatprep.subr.bf16.mxu0 0
    %683 = vmatpush1.bf16.msra.mxu0 0
    %684 = vmatprep.subr.bf16.mxu0 0
    %685 = vmatpush1.bf16.msra.mxu0 0
    %686 = vmatprep.subr.bf16.mxu0 0
    %687 = vmatpush1.bf16.msra.mxu0 %v367
    %688 = vmatprep.subr.bf16.mxu0 0
    %689 = vmatpush1.bf16.msra.mxu0 %v366
    %690 = vmatprep.subr.bf16.mxu0 0
    %691 = vmatpush1.bf16.msra.mxu0 %v365
    %692 = vmatprep.subr.bf16.mxu0 0
    %693 = vmatpush1.bf16.msra.mxu0 %v364
    %694 = vmatprep.subr.bf16.mxu0 0
    %695 = vmatpush2.bf16.msra.mxu0 0
    %696 = vmatprep.subr.bf16.mxu0 0
    %697 = vmatpush2.bf16.msra.mxu0 0
    %698 = vmatprep.subr.bf16.mxu0 0
    %699 = vmatpush2.bf16.msra.mxu0 0
    %700 = vmatprep.subr.bf16.mxu0 0
    %701 = vmatpush2.bf16.msra.mxu0 0
    %702 = vmatprep.subr.bf16.mxu0 0
    %703 = vmatpush2.bf16.msra.mxu0 0
    %704 = vmatprep.subr.bf16.mxu0 0
    %705 = vmatpush2.bf16.msra.mxu0 0
    %706 = vmatprep.subr.bf16.mxu0 0
    %707 = vmatpush2.bf16.msra.mxu0 0
    %708 = vmatprep.subr.bf16.mxu0 0
    %709 = vmatpush2.bf16.msra.mxu0 0
    %710 = vmatprep.mubr.bf16.mxu0 0
    %711 = vmatmul.mubr.bf16.gmra.mxu0 %v676
    %v712 = vpop.f32.mrf.mxu0
    %v713 = vadd.f32 %v346, %v712
    %v714 = vpop.f32.mrf.mxu0
    %v715 = vpop.f32.mrf.mxu0
    %v716 = vpop.f32.mrf.mxu0
    %717 = vdwg.mxu0
    %v718 = vxor.u32 %v713, 2147483648
    %v719 = vmul.f32 %v718, 1.442695
    %v720 = vpow.pop %v719
    %v721 = vadd.f32 %v720, 1.0
    %v722 = vrcp.pop %v721
    %v723 = vmul.f32 1.0, %v722
    %v724 = vmul.f32 %v723, 2.0
    %v725 = vsub.f32 %v724, 1.0
    %v726 = vmul.f32 %v723, %v585
    %728 = vrot.lane.b32.xlu0 %v725, 64
    %v729 = vpop.permute.xlu0 %728
    %v731 = vmul.f32 %v723, %v729
    %733 = vrot.lane.b32.xlu0 %v731, 32
    %v734 = vpop.permute.xlu0 %733
    %v736 = vadd.f32 %v726, %v734
    %v737 = vtanh.pop %v736
    %739 = vrot.lane.b32.xlu0 %v737, 64
    %v740 = vpop.permute.xlu0 %739
    %v742 = vmul.f32 %v723, %v740
    %v743 = vpack.c.bf16 %v664, %v664
    %745 = vrot.lane.b32.xlu0 %v743, 32
    %v746 = vpop.permute.xlu0 %745
    %v748 = vsel %vm193, %v746, 0
    %750 = vmatprep.subr.bf16.mxu0 0
    %751 = vmatpush1.bf16.msra.mxu0 0
    %752 = vmatprep.subr.bf16.mxu0 0
    %753 = vmatpush1.bf16.msra.mxu0 0
    %754 = vmatprep.subr.bf16.mxu0 0
    %755 = vmatpush1.bf16.msra.mxu0 0
    %756 = vmatprep.subr.bf16.mxu0 0
    %757 = vmatpush1.bf16.msra.mxu0 0
    %758 = vmatprep.subr.bf16.mxu0 0
    %759 = vmatpush1.bf16.msra.mxu0 0
    %760 = vmatprep.subr.bf16.mxu0 0
    %761 = vmatpush1.bf16.msra.mxu0 0
    %762 = vmatprep.subr.bf16.mxu0 0
    %763 = vmatpush1.bf16.msra.mxu0 %v190
    %764 = vmatprep.subr.bf16.mxu0 0
    %765 = vmatpush1.bf16.msra.mxu0 %v189
    %766 = vmatprep.subr.bf16.mxu0 0
    %767 = vmatpush2.bf16.msra.mxu0 0
    %768 = vmatprep.subr.bf16.mxu0 0
    %769 = vmatpush2.bf16.msra.mxu0 0
    %770 = vmatprep.subr.bf16.mxu0 0
    %771 = vmatpush2.bf16.msra.mxu0 0
    %772 = vmatprep.subr.bf16.mxu0 0
    %773 = vmatpush2.bf16.msra.mxu0 0
    %774 = vmatprep.subr.bf16.mxu0 0
    %775 = vmatpush2.bf16.msra.mxu0 0
    %776 = vmatprep.subr.bf16.mxu0 0
    %777 = vmatpush2.bf16.msra.mxu0 0
    %778 = vmatprep.subr.bf16.mxu0 0
    %779 = vmatpush2.bf16.msra.mxu0 0
    %780 = vmatprep.subr.bf16.mxu0 0
    %781 = vmatpush2.bf16.msra.mxu0 0
    %782 = vmatprep.mubr.bf16.mxu0 0
    %783 = vmatmul.mubr.bf16.gmra.mxu0 %v748
    %v784 = vpop.f32.mrf.mxu0
    %v785 = vadd.f32 0.0, %v784
    %v786 = vpop.f32.mrf.mxu0
    %v787 = vpop.f32.mrf.mxu0
    %v788 = vpop.f32.mrf.mxu0
    %789 = vdwg.mxu0
    %v790 = vadd.f32 %v154, %v785
    %v791 = vxor.u32 %v790, 2147483648
    %v792 = vmul.f32 %v791, 1.442695
    %v793 = vpow.pop %v792
    %v794 = vadd.f32 %v793, 1.0
    %v795 = vrcp.pop %v794
    %v796 = vmul.f32 1.0, %v795
    %v797 = vmul.f32 %v796, 2.0
    %v798 = vsub.f32 %v797, 1.0
    %v799 = vmul.f32 %v796, %v658
    %801 = vrot.lane.b32.xlu0 %v798, 64
    %v802 = vpop.permute.xlu0 %801
    %v804 = vmul.f32 %v796, %v802
    %806 = vrot.lane.b32.xlu0 %v804, 32
    %v807 = vpop.permute.xlu0 %806
    %v809 = vadd.f32 %v799, %v807
    %v810 = vtanh.pop %v809
    %812 = vrot.lane.b32.xlu0 %v810, 64
    %v813 = vpop.permute.xlu0 %812
    %v815 = vmul.f32 %v796, %v813
    %817 = vrot.lane.b32.xlu0 %v664, 32
    %v818 = vpop.permute.xlu0 %817
    %821 = vrot.lane.b32.xlu0 %v742, 64
    %v822 = vpop.permute.xlu0 %821
    %v824 = vsel %vm193, %v818, %v822
    %v825 = vpack.c.bf16 %v824, %v824
    %v827 = vsel %vm372, %v825, 0
    %829 = vmatprep.subr.bf16.mxu0 0
    %830 = vmatpush1.bf16.msra.mxu0 0
    %831 = vmatprep.subr.bf16.mxu0 0
    %832 = vmatpush1.bf16.msra.mxu0 0
    %833 = vmatprep.subr.bf16.mxu0 0
    %834 = vmatpush1.bf16.msra.mxu0 0
    %835 = vmatprep.subr.bf16.mxu0 0
    %836 = vmatpush1.bf16.msra.mxu0 0
    %837 = vmatprep.subr.bf16.mxu0 0
    %838 = vmatpush1.bf16.msra.mxu0 %v367
    %839 = vmatprep.subr.bf16.mxu0 0
    %840 = vmatpush1.bf16.msra.mxu0 %v366
    %841 = vmatprep.subr.bf16.mxu0 0
    %842 = vmatpush1.bf16.msra.mxu0 %v365
    %843 = vmatprep.subr.bf16.mxu0 0
    %844 = vmatpush1.bf16.msra.mxu0 %v364
    %845 = vmatprep.subr.bf16.mxu0 0
    %846 = vmatpush2.bf16.msra.mxu0 0
    %847 = vmatprep.subr.bf16.mxu0 0
    %848 = vmatpush2.bf16.msra.mxu0 0
    %849 = vmatprep.subr.bf16.mxu0 0
    %850 = vmatpush2.bf16.msra.mxu0 0
    %851 = vmatprep.subr.bf16.mxu0 0
    %852 = vmatpush2.bf16.msra.mxu0 0
    %853 = vmatprep.subr.bf16.mxu0 0
    %854 = vmatpush2.bf16.msra.mxu0 0
    %855 = vmatprep.subr.bf16.mxu0 0
    %856 = vmatpush2.bf16.msra.mxu0 0
    %857 = vmatprep.subr.bf16.mxu0 0
    %858 = vmatpush2.bf16.msra.mxu0 0
    %859 = vmatprep.subr.bf16.mxu0 0
    %860 = vmatpush2.bf16.msra.mxu0 0
    %861 = vmatprep.mubr.bf16.mxu0 0
    %862 = vmatmul.mubr.bf16.gmra.mxu0 %v827
    %v863 = vpop.f32.mrf.mxu0
    %v864 = vadd.f32 %v346, %v863
    %v865 = vpop.f32.mrf.mxu0
    %v866 = vpop.f32.mrf.mxu0
    %v867 = vpop.f32.mrf.mxu0
    %868 = vdwg.mxu0
    %v869 = vxor.u32 %v864, 2147483648
    %v870 = vmul.f32 %v869, 1.442695
    %v871 = vpow.pop %v870
    %v872 = vadd.f32 %v871, 1.0
    %v873 = vrcp.pop %v872
    %v874 = vmul.f32 1.0, %v873
    %v875 = vmul.f32 %v874, 2.0
    %v876 = vsub.f32 %v875, 1.0
    %v877 = vmul.f32 %v874, %v736
    %879 = vrot.lane.b32.xlu0 %v876, 64
    %v880 = vpop.permute.xlu0 %879
    %v882 = vmul.f32 %v874, %v880
    %884 = vrot.lane.b32.xlu0 %v882, 32
    %v885 = vpop.permute.xlu0 %884
    %v887 = vadd.f32 %v877, %v885
    %v888 = vtanh.pop %v887
    %890 = vrot.lane.b32.xlu0 %v888, 64
    %v891 = vpop.permute.xlu0 %890
    %v893 = vmul.f32 %v874, %v891
    %v894 = vpack.c.bf16 %v815, %v815
    %896 = vrot.lane.b32.xlu0 %v894, 32
    %v897 = vpop.permute.xlu0 %896
    %v899 = vsel %vm193, %v897, 0
    %901 = vmatprep.subr.bf16.mxu0 0
    %902 = vmatpush1.bf16.msra.mxu0 0
    %903 = vmatprep.subr.bf16.mxu0 0
    %904 = vmatpush1.bf16.msra.mxu0 0
    %905 = vmatprep.subr.bf16.mxu0 0
    %906 = vmatpush1.bf16.msra.mxu0 0
    %907 = vmatprep.subr.bf16.mxu0 0
    %908 = vmatpush1.bf16.msra.mxu0 0
    %909 = vmatprep.subr.bf16.mxu0 0
    %910 = vmatpush1.bf16.msra.mxu0 0
    %911 = vmatprep.subr.bf16.mxu0 0
    %912 = vmatpush1.bf16.msra.mxu0 0
    %913 = vmatprep.subr.bf16.mxu0 0
    %914 = vmatpush1.bf16.msra.mxu0 %v190
    %915 = vmatprep.subr.bf16.mxu0 0
    %916 = vmatpush1.bf16.msra.mxu0 %v189
    %917 = vmatprep.subr.bf16.mxu0 0
    %918 = vmatpush2.bf16.msra.mxu0 0
    %919 = vmatprep.subr.bf16.mxu0 0
    %920 = vmatpush2.bf16.msra.mxu0 0
    %921 = vmatprep.subr.bf16.mxu0 0
    %922 = vmatpush2.bf16.msra.mxu0 0
    %923 = vmatprep.subr.bf16.mxu0 0
    %924 = vmatpush2.bf16.msra.mxu0 0
    %925 = vmatprep.subr.bf16.mxu0 0
    %926 = vmatpush2.bf16.msra.mxu0 0
    %927 = vmatprep.subr.bf16.mxu0 0
    %928 = vmatpush2.bf16.msra.mxu0 0
    %929 = vmatprep.subr.bf16.mxu0 0
    %930 = vmatpush2.bf16.msra.mxu0 0
    %931 = vmatprep.subr.bf16.mxu0 0
    %932 = vmatpush2.bf16.msra.mxu0 0
    %933 = vmatprep.mubr.bf16.mxu0 0
    %934 = vmatmul.mubr.bf16.gmra.mxu0 %v899
    %v935 = vpop.f32.mrf.mxu0
    %v936 = vadd.f32 0.0, %v935
    %v937 = vpop.f32.mrf.mxu0
    %v938 = vpop.f32.mrf.mxu0
    %v939 = vpop.f32.mrf.mxu0
    %940 = vdwg.mxu0
    %v941 = vadd.f32 %v157, %v936
    %v942 = vxor.u32 %v941, 2147483648
    %v943 = vmul.f32 %v942, 1.442695
    %v944 = vpow.pop %v943
    %v945 = vadd.f32 %v944, 1.0
    %v946 = vrcp.pop %v945
    %v947 = vmul.f32 1.0, %v946
    %v948 = vmul.f32 %v947, 2.0
    %v949 = vsub.f32 %v948, 1.0
    %v950 = vmul.f32 %v947, %v809
    %952 = vrot.lane.b32.xlu0 %v949, 64
    %v953 = vpop.permute.xlu0 %952
    %v955 = vmul.f32 %v947, %v953
    %957 = vrot.lane.b32.xlu0 %v955, 32
    %v958 = vpop.permute.xlu0 %957
    %v960 = vadd.f32 %v950, %v958
    %v961 = vtanh.pop %v960
    %963 = vrot.lane.b32.xlu0 %v961, 64
    %v964 = vpop.permute.xlu0 %963
    %v966 = vmul.f32 %v947, %v964
    %968 = vrot.lane.b32.xlu0 %v815, 32
    %v969 = vpop.permute.xlu0 %968
    %972 = vrot.lane.b32.xlu0 %v893, 64
    %v973 = vpop.permute.xlu0 %972
    %v975 = vsel %vm193, %v969, %v973
    %v976 = vpack.c.bf16 %v975, %v975
    %v978 = vsel %vm372, %v976, 0
    %980 = vmatprep.subr.bf16.mxu0 0
    %981 = vmatpush1.bf16.msra.mxu0 0
    %982 = vmatprep.subr.bf16.mxu0 0
    %983 = vmatpush1.bf16.msra.mxu0 0
    %984 = vmatprep.subr.bf16.mxu0 0
    %985 = vmatpush1.bf16.msra.mxu0 0
    %986 = vmatprep.subr.bf16.mxu0 0
    %987 = vmatpush1.bf16.msra.mxu0 0
    %988 = vmatprep.subr.bf16.mxu0 0
    %989 = vmatpush1.bf16.msra.mxu0 %v367
    %990 = vmatprep.subr.bf16.mxu0 0
    %991 = vmatpush1.bf16.msra.mxu0 %v366
    %992 = vmatprep.subr.bf16.mxu0 0
    %993 = vmatpush1.bf16.msra.mxu0 %v365
    %994 = vmatprep.subr.bf16.mxu0 0
    %995 = vmatpush1.bf16.msra.mxu0 %v364
    %996 = vmatprep.subr.bf16.mxu0 0
    %997 = vmatpush2.bf16.msra.mxu0 0
    %998 = vmatprep.subr.bf16.mxu0 0
    %999 = vmatpush2.bf16.msra.mxu0 0
    %1000 = vmatprep.subr.bf16.mxu0 0
    %1001 = vmatpush2.bf16.msra.mxu0 0
    %1002 = vmatprep.subr.bf16.mxu0 0
    %1003 = vmatpush2.bf16.msra.mxu0 0
    %1004 = vmatprep.subr.bf16.mxu0 0
    %1005 = vmatpush2.bf16.msra.mxu0 0
    %1006 = vmatprep.subr.bf16.mxu0 0
    %1007 = vmatpush2.bf16.msra.mxu0 0
    %1008 = vmatprep.subr.bf16.mxu0 0
    %1009 = vmatpush2.bf16.msra.mxu0 0
    %1010 = vmatprep.subr.bf16.mxu0 0
    %1011 = vmatpush2.bf16.msra.mxu0 0
    %1012 = vmatprep.mubr.bf16.mxu0 0
    %1013 = vmatmul.mubr.bf16.gmra.mxu0 %v978
    %v1014 = vpop.f32.mrf.mxu0
    %v1015 = vadd.f32 %v346, %v1014
    %v1016 = vpop.f32.mrf.mxu0
    %v1017 = vpop.f32.mrf.mxu0
    %v1018 = vpop.f32.mrf.mxu0
    %1019 = vdwg.mxu0
    %v1020 = vxor.u32 %v1015, 2147483648
    %v1021 = vmul.f32 %v1020, 1.442695
    %v1022 = vpow.pop %v1021
    %v1023 = vadd.f32 %v1022, 1.0
    %v1024 = vrcp.pop %v1023
    %v1025 = vmul.f32 1.0, %v1024
    %v1026 = vmul.f32 %v1025, 2.0
    %v1027 = vsub.f32 %v1026, 1.0
    %v1028 = vmul.f32 %v1025, %v887
    %1030 = vrot.lane.b32.xlu0 %v1027, 64
    %v1031 = vpop.permute.xlu0 %1030
    %v1033 = vmul.f32 %v1025, %v1031
    %1035 = vrot.lane.b32.xlu0 %v1033, 32
    %v1036 = vpop.permute.xlu0 %1035
    %v1038 = vadd.f32 %v1028, %v1036
    %v1039 = vtanh.pop %v1038
    %1041 = vrot.lane.b32.xlu0 %v1039, 64
    %v1042 = vpop.permute.xlu0 %1041
    %v1044 = vmul.f32 %v1025, %v1042
    %v1045 = vpack.c.bf16 %v966, %v966
    %1047 = vrot.lane.b32.xlu0 %v1045, 32
    %v1048 = vpop.permute.xlu0 %1047
    %v1050 = vsel %vm193, %v1048, 0
    %1052 = vmatprep.subr.bf16.mxu0 0
    %1053 = vmatpush1.bf16.msra.mxu0 0
    %1054 = vmatprep.subr.bf16.mxu0 0
    %1055 = vmatpush1.bf16.msra.mxu0 0
    %1056 = vmatprep.subr.bf16.mxu0 0
    %1057 = vmatpush1.bf16.msra.mxu0 0
    %1058 = vmatprep.subr.bf16.mxu0 0
    %1059 = vmatpush1.bf16.msra.mxu0 0
    %1060 = vmatprep.subr.bf16.mxu0 0
    %1061 = vmatpush1.bf16.msra.mxu0 0
    %1062 = vmatprep.subr.bf16.mxu0 0
    %1063 = vmatpush1.bf16.msra.mxu0 0
    %1064 = vmatprep.subr.bf16.mxu0 0
    %1065 = vmatpush1.bf16.msra.mxu0 %v190
    %1066 = vmatprep.subr.bf16.mxu0 0
    %1067 = vmatpush1.bf16.msra.mxu0 %v189
    %1068 = vmatprep.subr.bf16.mxu0 0
    %1069 = vmatpush2.bf16.msra.mxu0 0
    %1070 = vmatprep.subr.bf16.mxu0 0
    %1071 = vmatpush2.bf16.msra.mxu0 0
    %1072 = vmatprep.subr.bf16.mxu0 0
    %1073 = vmatpush2.bf16.msra.mxu0 0
    %1074 = vmatprep.subr.bf16.mxu0 0
    %1075 = vmatpush2.bf16.msra.mxu0 0
    %1076 = vmatprep.subr.bf16.mxu0 0
    %1077 = vmatpush2.bf16.msra.mxu0 0
    %1078 = vmatprep.subr.bf16.mxu0 0
    %1079 = vmatpush2.bf16.msra.mxu0 0
    %1080 = vmatprep.subr.bf16.mxu0 0
    %1081 = vmatpush2.bf16.msra.mxu0 0
    %1082 = vmatprep.subr.bf16.mxu0 0
    %1083 = vmatpush2.bf16.msra.mxu0 0
    %1084 = vmatprep.mubr.bf16.mxu0 0
    %1085 = vmatmul.mubr.bf16.gmra.mxu0 %v1050
    %v1086 = vpop.f32.mrf.mxu0
    %v1087 = vadd.f32 0.0, %v1086
    %v1088 = vpop.f32.mrf.mxu0
    %v1089 = vpop.f32.mrf.mxu0
    %v1090 = vpop.f32.mrf.mxu0
    %1091 = vdwg.mxu0
    %v1092 = vadd.f32 %v162, %v1087
    %v1093 = vxor.u32 %v1092, 2147483648
    %v1094 = vmul.f32 %v1093, 1.442695
    %v1095 = vpow.pop %v1094
    %v1096 = vadd.f32 %v1095, 1.0
    %v1097 = vrcp.pop %v1096
    %v1098 = vmul.f32 1.0, %v1097
    %v1099 = vmul.f32 %v1098, 2.0
    %v1100 = vsub.f32 %v1099, 1.0
    %v1101 = vmul.f32 %v1098, %v960
    %1103 = vrot.lane.b32.xlu0 %v1100, 64
    %v1104 = vpop.permute.xlu0 %1103
    %v1106 = vmul.f32 %v1098, %v1104
    %1108 = vrot.lane.b32.xlu0 %v1106, 32
    %v1109 = vpop.permute.xlu0 %1108
    %v1111 = vadd.f32 %v1101, %v1109
    %v1112 = vtanh.pop %v1111
    %1114 = vrot.lane.b32.xlu0 %v1112, 64
    %v1115 = vpop.permute.xlu0 %1114
    %v1117 = vmul.f32 %v1098, %v1115
    %1119 = vrot.lane.b32.xlu0 %v966, 32
    %v1120 = vpop.permute.xlu0 %1119
    %1123 = vrot.lane.b32.xlu0 %v1044, 64
    %v1124 = vpop.permute.xlu0 %1123
    %v1126 = vsel %vm193, %v1120, %v1124
    %v1127 = vpack.c.bf16 %v1126, %v1126
    %v1129 = vsel %vm372, %v1127, 0
    %1131 = vmatprep.subr.bf16.mxu0 0
    %1132 = vmatpush1.bf16.msra.mxu0 0
    %1133 = vmatprep.subr.bf16.mxu0 0
    %1134 = vmatpush1.bf16.msra.mxu0 0
    %1135 = vmatprep.subr.bf16.mxu0 0
    %1136 = vmatpush1.bf16.msra.mxu0 0
    %1137 = vmatprep.subr.bf16.mxu0 0
    %1138 = vmatpush1.bf16.msra.mxu0 0
    %1139 = vmatprep.subr.bf16.mxu0 0
    %1140 = vmatpush1.bf16.msra.mxu0 %v367
    %1141 = vmatprep.subr.bf16.mxu0 0
    %1142 = vmatpush1.bf16.msra.mxu0 %v366
    %1143 = vmatprep.subr.bf16.mxu0 0
    %1144 = vmatpush1.bf16.msra.mxu0 %v365
    %1145 = vmatprep.subr.bf16.mxu0 0
    %1146 = vmatpush1.bf16.msra.mxu0 %v364
    %1147 = vmatprep.subr.bf16.mxu0 0
    %1148 = vmatpush2.bf16.msra.mxu0 0
    %1149 = vmatprep.subr.bf16.mxu0 0
    %1150 = vmatpush2.bf16.msra.mxu0 0
    %1151 = vmatprep.subr.bf16.mxu0 0
    %1152 = vmatpush2.bf16.msra.mxu0 0
    %1153 = vmatprep.subr.bf16.mxu0 0
    %1154 = vmatpush2.bf16.msra.mxu0 0
    %1155 = vmatprep.subr.bf16.mxu0 0
    %1156 = vmatpush2.bf16.msra.mxu0 0
    %1157 = vmatprep.subr.bf16.mxu0 0
    %1158 = vmatpush2.bf16.msra.mxu0 0
    %1159 = vmatprep.subr.bf16.mxu0 0
    %1160 = vmatpush2.bf16.msra.mxu0 0
    %1161 = vmatprep.subr.bf16.mxu0 0
    %1162 = vmatpush2.bf16.msra.mxu0 0
    %1163 = vmatprep.mubr.bf16.mxu0 0
    %1164 = vmatmul.mubr.bf16.gmra.mxu0 %v1129
    %v1165 = vpop.f32.mrf.mxu0
    %v1166 = vadd.f32 %v346, %v1165
    %v1167 = vpop.f32.mrf.mxu0
    %v1168 = vpop.f32.mrf.mxu0
    %v1169 = vpop.f32.mrf.mxu0
    %1170 = vdwg.mxu0
    %v1171 = vxor.u32 %v1166, 2147483648
    %v1172 = vmul.f32 %v1171, 1.442695
    %v1173 = vpow.pop %v1172
    %v1174 = vadd.f32 %v1173, 1.0
    %v1175 = vrcp.pop %v1174
    %v1176 = vmul.f32 1.0, %v1175
    %v1177 = vmul.f32 %v1176, 2.0
    %v1178 = vsub.f32 %v1177, 1.0
    %v1179 = vmul.f32 %v1176, %v1038
    %1181 = vrot.lane.b32.xlu0 %v1178, 64
    %v1182 = vpop.permute.xlu0 %1181
    %v1184 = vmul.f32 %v1176, %v1182
    %1186 = vrot.lane.b32.xlu0 %v1184, 32
    %v1187 = vpop.permute.xlu0 %1186
    %v1189 = vadd.f32 %v1179, %v1187
    %v1190 = vtanh.pop %v1189
    %1192 = vrot.lane.b32.xlu0 %v1190, 64
    %v1193 = vpop.permute.xlu0 %1192
    %v1195 = vmul.f32 %v1176, %v1193
    %v1196 = vpack.c.bf16 %v1117, %v1117
    %1198 = vrot.lane.b32.xlu0 %v1196, 32
    %v1199 = vpop.permute.xlu0 %1198
    %v1201 = vsel %vm193, %v1199, 0
    %1203 = vmatprep.subr.bf16.mxu0 0
    %1204 = vmatpush1.bf16.msra.mxu0 0
    %1205 = vmatprep.subr.bf16.mxu0 0
    %1206 = vmatpush1.bf16.msra.mxu0 0
    %1207 = vmatprep.subr.bf16.mxu0 0
    %1208 = vmatpush1.bf16.msra.mxu0 0
    %1209 = vmatprep.subr.bf16.mxu0 0
    %1210 = vmatpush1.bf16.msra.mxu0 0
    %1211 = vmatprep.subr.bf16.mxu0 0
    %1212 = vmatpush1.bf16.msra.mxu0 0
    %1213 = vmatprep.subr.bf16.mxu0 0
    %1214 = vmatpush1.bf16.msra.mxu0 0
    %1215 = vmatprep.subr.bf16.mxu0 0
    %1216 = vmatpush1.bf16.msra.mxu0 %v190
    %1217 = vmatprep.subr.bf16.mxu0 0
    %1218 = vmatpush1.bf16.msra.mxu0 %v189
    %1219 = vmatprep.subr.bf16.mxu0 0
    %1220 = vmatpush2.bf16.msra.mxu0 0
    %1221 = vmatprep.subr.bf16.mxu0 0
    %1222 = vmatpush2.bf16.msra.mxu0 0
    %1223 = vmatprep.subr.bf16.mxu0 0
    %1224 = vmatpush2.bf16.msra.mxu0 0
    %1225 = vmatprep.subr.bf16.mxu0 0
    %1226 = vmatpush2.bf16.msra.mxu0 0
    %1227 = vmatprep.subr.bf16.mxu0 0
    %1228 = vmatpush2.bf16.msra.mxu0 0
    %1229 = vmatprep.subr.bf16.mxu0 0
    %1230 = vmatpush2.bf16.msra.mxu0 0
    %1231 = vmatprep.subr.bf16.mxu0 0
    %1232 = vmatpush2.bf16.msra.mxu0 0
    %1233 = vmatprep.subr.bf16.mxu0 0
    %1234 = vmatpush2.bf16.msra.mxu0 0
    %1235 = vmatprep.mubr.bf16.mxu0 0
    %1236 = vmatmul.mubr.bf16.gmra.mxu0 %v1201
    %v1237 = vpop.f32.mrf.mxu0
    %v1238 = vadd.f32 0.0, %v1237
    %v1239 = vpop.f32.mrf.mxu0
    %v1240 = vpop.f32.mrf.mxu0
    %v1241 = vpop.f32.mrf.mxu0
    %1242 = vdwg.mxu0
    %v1243 = vadd.f32 %v165, %v1238
    %v1244 = vxor.u32 %v1243, 2147483648
    %v1245 = vmul.f32 %v1244, 1.442695
    %v1246 = vpow.pop %v1245
    %v1247 = vadd.f32 %v1246, 1.0
    %v1248 = vrcp.pop %v1247
    %v1249 = vmul.f32 1.0, %v1248
    %v1250 = vmul.f32 %v1249, 2.0
    %v1251 = vsub.f32 %v1250, 1.0
    %v1252 = vmul.f32 %v1249, %v1111
    %1254 = vrot.lane.b32.xlu0 %v1251, 64
    %v1255 = vpop.permute.xlu0 %1254
    %v1257 = vmul.f32 %v1249, %v1255
    %1259 = vrot.lane.b32.xlu0 %v1257, 32
    %v1260 = vpop.permute.xlu0 %1259
    %v1262 = vadd.f32 %v1252, %v1260
    %v1263 = vtanh.pop %v1262
    %1265 = vrot.lane.b32.xlu0 %v1263, 64
    %v1266 = vpop.permute.xlu0 %1265
    %v1268 = vmul.f32 %v1249, %v1266
    %1270 = vrot.lane.b32.xlu0 %v1117, 32
    %v1271 = vpop.permute.xlu0 %1270
    %1274 = vrot.lane.b32.xlu0 %v1195, 64
    %v1275 = vpop.permute.xlu0 %1274
    %v1277 = vsel %vm193, %v1271, %v1275
    %v1278 = vpack.c.bf16 %v1277, %v1277
    %v1280 = vsel %vm372, %v1278, 0
    %1282 = vmatprep.subr.bf16.mxu0 0
    %1283 = vmatpush1.bf16.msra.mxu0 0
    %1284 = vmatprep.subr.bf16.mxu0 0
    %1285 = vmatpush1.bf16.msra.mxu0 0
    %1286 = vmatprep.subr.bf16.mxu0 0
    %1287 = vmatpush1.bf16.msra.mxu0 0
    %1288 = vmatprep.subr.bf16.mxu0 0
    %1289 = vmatpush1.bf16.msra.mxu0 0
    %1290 = vmatprep.subr.bf16.mxu0 0
    %1291 = vmatpush1.bf16.msra.mxu0 %v367
    %1292 = vmatprep.subr.bf16.mxu0 0
    %1293 = vmatpush1.bf16.msra.mxu0 %v366
    %1294 = vmatprep.subr.bf16.mxu0 0
    %1295 = vmatpush1.bf16.msra.mxu0 %v365
    %1296 = vmatprep.subr.bf16.mxu0 0
    %1297 = vmatpush1.bf16.msra.mxu0 %v364
    %1298 = vmatprep.subr.bf16.mxu0 0
    %1299 = vmatpush2.bf16.msra.mxu0 0
    %1300 = vmatprep.subr.bf16.mxu0 0
    %1301 = vmatpush2.bf16.msra.mxu0 0
    %1302 = vmatprep.subr.bf16.mxu0 0
    %1303 = vmatpush2.bf16.msra.mxu0 0
    %1304 = vmatprep.subr.bf16.mxu0 0
    %1305 = vmatpush2.bf16.msra.mxu0 0
    %1306 = vmatprep.subr.bf16.mxu0 0
    %1307 = vmatpush2.bf16.msra.mxu0 0
    %1308 = vmatprep.subr.bf16.mxu0 0
    %1309 = vmatpush2.bf16.msra.mxu0 0
    %1310 = vmatprep.subr.bf16.mxu0 0
    %1311 = vmatpush2.bf16.msra.mxu0 0
    %1312 = vmatprep.subr.bf16.mxu0 0
    %1313 = vmatpush2.bf16.msra.mxu0 0
    %1314 = vmatprep.mubr.bf16.mxu0 0
    %1315 = vmatmul.mubr.bf16.gmra.mxu0 %v1280
    %v1316 = vpop.f32.mrf.mxu0
    %v1317 = vadd.f32 %v346, %v1316
    %v1318 = vpop.f32.mrf.mxu0
    %v1319 = vpop.f32.mrf.mxu0
    %v1320 = vpop.f32.mrf.mxu0
    %1321 = vdwg.mxu0
    %v1322 = vxor.u32 %v1317, 2147483648
    %v1323 = vmul.f32 %v1322, 1.442695
    %v1324 = vpow.pop %v1323
    %v1325 = vadd.f32 %v1324, 1.0
    %v1326 = vrcp.pop %v1325
    %v1327 = vmul.f32 1.0, %v1326
    %v1328 = vmul.f32 %v1327, 2.0
    %v1329 = vsub.f32 %v1328, 1.0
    %v1330 = vmul.f32 %v1327, %v1189
    %1332 = vrot.lane.b32.xlu0 %v1329, 64
    %v1333 = vpop.permute.xlu0 %1332
    %v1335 = vmul.f32 %v1327, %v1333
    %1337 = vrot.lane.b32.xlu0 %v1335, 32
    %v1338 = vpop.permute.xlu0 %1337
    %v1340 = vadd.f32 %v1330, %v1338
    %v1341 = vtanh.pop %v1340
    %1343 = vrot.lane.b32.xlu0 %v1341, 64
    %v1344 = vpop.permute.xlu0 %1343
    %v1346 = vmul.f32 %v1327, %v1344
    %1348 = vrot.lane.b32.xlu0 %v1268, 32
    %v1349 = vpop.permute.xlu0 %1348
    %1352 = vrot.lane.b32.xlu0 %v1346, 64
    %v1353 = vpop.permute.xlu0 %1352
    %v1355 = vsel %vm193, %v1349, %v1353
    %v1356 = vpack.c.bf16 %v1355, %v1355
    %v1358 = vsel %vm372, %v1356, 0
    %1360 = vmatprep.subr.bf16.mxu0 0
    %1361 = vmatpush1.bf16.msra.mxu0 0
    %1362 = vmatprep.subr.bf16.mxu0 0
    %1363 = vmatpush1.bf16.msra.mxu0 0
    %1364 = vmatprep.subr.bf16.mxu0 0
    %1365 = vmatpush1.bf16.msra.mxu0 0
    %1366 = vmatprep.subr.bf16.mxu0 0
    %1367 = vmatpush1.bf16.msra.mxu0 0
    %1368 = vmatprep.subr.bf16.mxu0 0
    %1369 = vmatpush1.bf16.msra.mxu0 %v367
    %1370 = vmatprep.subr.bf16.mxu0 0
    %1371 = vmatpush1.bf16.msra.mxu0 %v366
    %1372 = vmatprep.subr.bf16.mxu0 0
    %1373 = vmatpush1.bf16.msra.mxu0 %v365
    %1374 = vmatprep.subr.bf16.mxu0 0
    %1375 = vmatpush1.bf16.msra.mxu0 %v364
    %1376 = vmatprep.subr.bf16.mxu0 0
    %1377 = vmatpush2.bf16.msra.mxu0 0
    %1378 = vmatprep.subr.bf16.mxu0 0
    %1379 = vmatpush2.bf16.msra.mxu0 0
    %1380 = vmatprep.subr.bf16.mxu0 0
    %1381 = vmatpush2.bf16.msra.mxu0 0
    %1382 = vmatprep.subr.bf16.mxu0 0
    %1383 = vmatpush2.bf16.msra.mxu0 0
    %1384 = vmatprep.subr.bf16.mxu0 0
    %1385 = vmatpush2.bf16.msra.mxu0 0
    %1386 = vmatprep.subr.bf16.mxu0 0
    %1387 = vmatpush2.bf16.msra.mxu0 0
    %1388 = vmatprep.subr.bf16.mxu0 0
    %1389 = vmatpush2.bf16.msra.mxu0 0
    %1390 = vmatprep.subr.bf16.mxu0 0
    %1391 = vmatpush2.bf16.msra.mxu0 0
    %1392 = vmatprep.mubr.bf16.mxu0 0
    %1393 = vmatmul.mubr.bf16.gmra.mxu0 %v1358
    %v1394 = vpop.f32.mrf.mxu0
    %v1395 = vadd.f32 %v346, %v1394
    %v1396 = vpop.f32.mrf.mxu0
    %v1397 = vpop.f32.mrf.mxu0
    %v1398 = vpop.f32.mrf.mxu0
    %1399 = vdwg.mxu0
    %v1400 = vxor.u32 %v1395, 2147483648
    %v1401 = vmul.f32 %v1400, 1.442695
    %v1402 = vpow.pop %v1401
    %v1403 = vadd.f32 %v1402, 1.0
    %v1404 = vrcp.pop %v1403
    %v1405 = vmul.f32 1.0, %v1404
    %v1406 = vmul.f32 %v1405, 2.0
    %v1407 = vsub.f32 %v1406, 1.0
    %v1408 = vmul.f32 %v1405, %v1340
    %1410 = vrot.lane.b32.xlu0 %v1407, 64
    %v1411 = vpop.permute.xlu0 %1410
    %v1413 = vmul.f32 %v1405, %v1411
    %1415 = vrot.lane.b32.xlu0 %v1413, 32
    %v1416 = vpop.permute.xlu0 %1415
    %v1418 = vadd.f32 %v1408, %v1416
    %v1419 = vtanh.pop %v1418
    %1421 = vrot.lane.b32.xlu0 %v1419, 64
    %v1422 = vpop.permute.xlu0 %1421
    %v1424 = vmul.f32 %v1405, %v1422
    %v1425 = vld [vmem:[%s6] sm:$0x1]
    %v1426 = vld [vmem:[#allocation2] sm:$0x1]
    %1428 = vset.pattern.permute.xlu0 0
    %1429 = vperm.xlu0 %1428, %v1426
    %v1430 = vpop.permute.xlu0 %1429
    %v1432 = vlaneseq
    %v1433 = vshrl.u32 %v1432, 7
    %v1434 = vsub.s32 0, %v1433
    %v1435 = vrot.slane %v1430, %v1434
    %1437 = vrot.lane.b32.xlu0 %v1424, 32
    %v1438 = vpop.permute.xlu0 %1437
    %v1440 = vsel %vm193, %v1425, 0
    %v1442 = vsel %vm193, %v1438, 0
    %1444 = vmatprep.subr.mxu0 0.0
    %1445 = vmatpush1.xpose.msra.mxu0 0.0
    %1446 = vmatprep.subr.mxu0 0.0
    %1447 = vmatpush1.xpose.msra.mxu0 0.0
    %1448 = vmatprep.subr.mxu0 0.0
    %1449 = vmatpush1.xpose.msra.mxu0 0.0
    %1450 = vmatprep.subr.mxu0 0.0
    %1451 = vmatpush1.xpose.msra.mxu0 0.0
    %1452 = vmatprep.subr.mxu0 0.0
    %1453 = vmatpush1.xpose.msra.mxu0 0.0
    %1454 = vmatprep.subr.mxu0 0.0
    %1455 = vmatpush1.xpose.msra.mxu0 0.0
    %1456 = vmatprep.subr.mxu0 0.0
    %1457 = vmatpush1.xpose.msra.mxu0 0.0
    %1458 = vmatprep.subr.mxu0 0.0
    %1459 = vmatpush1.xpose.msra.mxu0 0.0
    %1460 = vmatprep.subr.mxu0 0.0
    %1461 = vmatpush1.xpose.msra.mxu0 0.0
    %1462 = vmatprep.subr.mxu0 0.0
    %1463 = vmatpush1.xpose.msra.mxu0 0.0
    %1464 = vmatprep.subr.mxu0 0.0
    %1465 = vmatpush1.xpose.msra.mxu0 0.0
    %1466 = vmatprep.subr.mxu0 0.0
    %1467 = vmatpush1.xpose.msra.mxu0 0.0
    %1468 = vmatprep.subr.mxu0 0.0
    %1469 = vmatpush1.xpose.msra.mxu0 0.0
    %1470 = vmatprep.subr.mxu0 0.0
    %1471 = vmatpush1.xpose.msra.mxu0 0.0
    %1472 = vmatprep.subr.mxu0 0.0
    %1473 = vmatpush1.xpose.msra.mxu0 0.0
    %1474 = vmatprep.subr.mxu0 0.0
    %1475 = vmatpush1.xpose.msra.mxu0 %v1442
    %1476 = vmatprep.subr.mxu0 0.0
    %1477 = vmatpush2.xpose.msra.mxu0 0.0
    %1478 = vmatprep.subr.mxu0 0.0
    %1479 = vmatpush2.xpose.msra.mxu0 0.0
    %1480 = vmatprep.subr.mxu0 0.0
    %1481 = vmatpush2.xpose.msra.mxu0 0.0
    %1482 = vmatprep.subr.mxu0 0.0
    %1483 = vmatpush2.xpose.msra.mxu0 0.0
    %1484 = vmatprep.subr.mxu0 0.0
    %1485 = vmatpush2.xpose.msra.mxu0 0.0
    %1486 = vmatprep.subr.mxu0 0.0
    %1487 = vmatpush2.xpose.msra.mxu0 0.0
    %1488 = vmatprep.subr.mxu0 0.0
    %1489 = vmatpush2.xpose.msra.mxu0 0.0
    %1490 = vmatprep.subr.mxu0 0.0
    %1491 = vmatpush2.xpose.msra.mxu0 0.0
    %1492 = vmatprep.subr.mxu0 0.0
    %1493 = vmatpush2.xpose.msra.mxu0 0.0
    %1494 = vmatprep.subr.mxu0 0.0
    %1495 = vmatpush2.xpose.msra.mxu0 0.0
    %1496 = vmatprep.subr.mxu0 0.0
    %1497 = vmatpush2.xpose.msra.mxu0 0.0
    %1498 = vmatprep.subr.mxu0 0.0
    %1499 = vmatpush2.xpose.msra.mxu0 0.0
    %1500 = vmatprep.subr.mxu0 0.0
    %1501 = vmatpush2.xpose.msra.mxu0 0.0
    %1502 = vmatprep.subr.mxu0 0.0
    %1503 = vmatpush2.xpose.msra.mxu0 0.0
    %1504 = vmatprep.subr.mxu0 0.0
    %1505 = vmatpush2.xpose.msra.mxu0 0.0
    %1506 = vmatprep.subr.mxu0 0.0
    %1507 = vmatpush2.xpose.msra.mxu0 0.0
    %1508 = vmatprep.mubr.f32.mxu0 0.0
    %1509 = vmatmul.mubr.f32.gmra.mxu0 %v1440
    %v1510 = vpop.f32.mrf.mxu0
    %v1511 = vadd.f32 %v1435, %v1510
    %v1512 = vpop.f32.mrf.mxu0
    %1513 = vdwg.mxu0
    %vm1514 = vcmask 57344
    %1515 = vst.msk [vmem:[#allocation6] sm:$0x1] %vm1514, %v1511
    // Predicated region
    $region38: #{tpu_custom_call.1} parent=1 // pred_check
      _
    $region39: #{tpu_custom_call.1} parent=1 // pred_check_branch
      %1517 = sbr.rel (0) target = $region41
    $region40: #{tpu_custom_call.1} parent=1 // pred_region
      %s1519 = ssub.s32 16, 16
      %1520 = vsyncadd [#allocation5], %s1519
      %s1522 = sshll.u32 [#allocation6], 4
      %s1523 = int_to_ptr.vmem [resolvable:$true] %s1522
      %1525 = dma.vmem_to_hbm [thread:$0]  %s1523, 16, %s8, [#allocation5]
    $region41: #{tpu_custom_call.1} parent=1 // pred_fallthru
      _
    // Predicated region
    $region42: #{tpu_custom_call.1} parent=1 // pred_check
      _
    $region43: #{tpu_custom_call.1} parent=1 // pred_check_branch
      %1527 = sbr.rel (0) target = $region45
    $region44: #{tpu_custom_call.1} parent=1 // pred_region
      %1528 = dma.done [#allocation5], 16
    $region45: #{tpu_custom_call.1} parent=1 // pred_fallthru
      _
    %1529 = vsyncpa [#allocation4], 1
    %1530 = vsyncpa [#allocation5], 1

</llo_original>
